<compile_context>
chip_gen: v7x
topology: tpu7x:2x2x1
jax: 0.10.0
libtpu: 0.0.40
codegen_flags: <defaults>
</compile_context>

<pallas_src>
import functools

import jax
import jax.numpy as jnp
from jax import lax
from jax.experimental import pallas as pl
from jax.experimental.pallas import tpu as pltpu


def _round_up(x, m):
    return ((x + m - 1) // m) * m


# ---------------------------------------------------------------------------
# Pass 1: per-tile partial semantic-attention logits.
#   partial_m = sum_{valid node rows} tanh(z_m @ W1 + b1) @ W2
# One fused bf16 (M*tn, D) @ (D, HP) MXU matmul per tile (f32 accumulation),
# lane-reduce first, then tiny per-metapath sublane sums.  Per-tile output is
# a lane-dense (1, 1, 128) row with the M partials in lanes [0, M).  Node rows
# past the true node count (last partial tile) are masked with a select, so
# undefined/NaN contents of the out-of-bounds z rows never propagate.
# ---------------------------------------------------------------------------
def _logits_kernel(z_ref, w1_ref, b1_ref, w2t_ref, out_ref, *,
                   num_meta, tile_n, num_nodes):
    M, tn = num_meta, tile_n
    D = z_ref.shape[-1]
    i = pl.program_id(0)

    # Fused projection over all metapaths at once.  The reshape is a no-op
    # relayout (tn % 8 == 0 and the lane dim D is unchanged); bf16 inputs keep
    # the MXU off the f32-emulation path on v5e/v6e.
    zf = z_ref[...].reshape(M * tn, D).astype(jnp.bfloat16)
    p = jnp.tanh(
        jnp.dot(zf, w1_ref[...], preferred_element_type=jnp.float32) + b1_ref[...]
    )                                              # (M*tn, HP) f32
    # Lane reduce first: per-(metapath, node) logit.
    s = jnp.sum(p * w2t_ref[...], axis=-1, keepdims=True)   # (M*tn, 1)

    # Mask node rows beyond the true node count.  Keep the SELECT form: the
    # out-of-bounds rows of the last z tile are undefined and may hold NaN/Inf.
    local = lax.broadcasted_iota(jnp.int32, (tn, 1), 0)
    valid = (i * tn + local) < num_nodes           # (tn, 1) bool

    lane = lax.broadcasted_iota(jnp.int32, (1, 1, 128), 2)
    row = jnp.zeros((1, 1, 128), jnp.float32)
    for m in range(M):                             # static, tiny M
        sm = s[m * tn:(m + 1) * tn]                # (tn, 1), sublane-aligned
        part = jnp.sum(jnp.where(valid, sm, 0.0))
        row = row + jnp.where(lane == m, part, 0.0)
    out_ref[...] = row


# ---------------------------------------------------------------------------
# Pass 2: beta-weighted sum over metapaths (h) + predict matmul (y).
# beta lives in SMEM (M scalars); y is stored UN-padded at (tn, out_size)
# (narrow masked stores are negligible next to the z-tile reads).
# ---------------------------------------------------------------------------
def _combine_kernel(beta_ref, z_ref, wp_ref, bp_ref, h_ref, y_ref, *, num_meta):
    h = beta_ref[0] * z_ref[0].astype(jnp.float32)
    for m in range(1, num_meta):
        h = h + beta_ref[m] * z_ref[m].astype(jnp.float32)
    h_ref[...] = h.astype(h_ref.dtype)
    y_ref[...] = (
        jnp.dot(h, wp_ref[...], preferred_element_type=jnp.float32) + bp_ref[...]
    ).astype(y_ref.dtype)


def han_forward(z, w1, b1, w2, wp, bp, *, tile_n=2048):
    """Fused SemanticAttention + HAN.predict forward.

    z  : (M, N, D) per-metapath GAT embeddings (f32 or bf16), metapath-major.
    w1 : (D, H), b1: (1, H) or (H,), w2: (H, 1)   SemanticAttention.project
    wp : (D, out_size), bp: (1, out_size) or (out_size,)   HAN.predict
    Returns (h, y): h (N, D) in z.dtype (layer embedding), y (N, out_size) f32.
    """
    M, N, D = z.shape
    H = w1.shape[1]
    out_size = wp.shape[1]
    assert M <= 128, "metapath count must fit one lane row"

    f32 = jnp.float32
    b1 = jnp.reshape(b1, (1, H)).astype(f32)
    w2t = jnp.reshape(w2, (1, H)).astype(f32)       # (H,1) -> (1,H)
    wp = wp.astype(f32)
    bp = jnp.reshape(bp, (1, out_size)).astype(f32)

    # Lane-dense padding of the projection hidden dim so the pass-1 matmul
    # tiles are full-width (padded columns contribute exactly zero).
    HP = max(128, _round_up(H, 128))
    w1 = w1.astype(f32)
    if HP != H:
        w1 = jnp.pad(w1, ((0, 0), (0, HP - H)))
        b1 = jnp.pad(b1, ((0, 0), (0, HP - H)))
        w2t = jnp.pad(w2t, ((0, 0), (0, HP - H)))
    w1 = w1.astype(jnp.bfloat16)                     # MXU-native pass-1 weights

    # Per-pass tile-size / VMEM budgeting (v7x: 64 MiB, v5e/v6e: 128 MiB).
    try:
        vmem_cap = pltpu.get_tpu_info().vmem_capacity_bytes
    except Exception:                                # pragma: no cover
        vmem_cap = 64 * 1024 * 1024
    vmem_budget = vmem_cap // 2
    z_item = z.dtype.itemsize

    # Per node row: double-buffered tiles + in-kernel f32 intermediates.
    bytes1 = 2 * M * D * z_item + M * D * 2 + 2 * M * HP * 4        # pass 1
    bytes2 = (2 * M * D * z_item + 2 * D * z_item                    # pass 2
              + 2 * out_size * 4 + (M + 1) * D * 4)

    def pick_tile(bytes_per_row):
        cap_rows = max(8, vmem_budget // max(bytes_per_row, 1))
        tn = min(tile_n, _round_up(N, 8), (cap_rows // 8) * 8)
        if N > 8:
            # v7x megacore: keep >= 2 parallel grid steps so both TCs get work.
            tn = min(tn, _round_up(pl.cdiv(N, 2), 8))
        return max(8, (tn // 8) * 8)

    def vmem_limit(tn, bytes_per_row):
        need = 2 * tn * bytes_per_row + (4 << 20)
        return int(min(max(need, 32 << 20), (vmem_cap * 3) // 4))

    tn1 = pick_tile(bytes1)
    tn2 = pick_tile(bytes2)
    nt1 = pl.cdiv(N, tn1)
    nt2 = pl.cdiv(N, tn2)

    # ---- Pass 1: partial logit sums per node tile (fully parallel grid).
    logits_partial = pl.pallas_call(
        functools.partial(_logits_kernel, num_meta=M, tile_n=tn1, num_nodes=N),
        grid=(nt1,),
        in_specs=[
            pl.BlockSpec((M, tn1, D), lambda i: (0, i, 0)),
            pl.BlockSpec((D, HP), lambda i: (0, 0)),
            pl.BlockSpec((1, HP), lambda i: (0, 0)),
            pl.BlockSpec((1, HP), lambda i: (0, 0)),
        ],
        out_specs=pl.BlockSpec((1, 1, 128), lambda i: (i, 0, 0)),
        out_shape=jax.ShapeDtypeStruct((nt1, 1, 128), jnp.float32),
        compiler_params=pltpu.CompilerParams(
            dimension_semantics=("parallel",),
            vmem_limit_bytes=vmem_limit(tn1, bytes1),
        ),
    )(z, w1, b1, w2t)

    # ---- Softmax over metapaths (M scalars) in plain JAX: beta is tiny.
    logits = jnp.sum(logits_partial[:, 0, :M], axis=0) / N      # mean over nodes
    beta = jax.nn.softmax(logits, axis=0).astype(jnp.float32)   # (M,)

    # ---- Pass 2: beta-weighted sum + predict matmul (parallel grid).
    # beta is M floats in SMEM; y is written un-padded (no post-slice pass).
    h, y = pl.pallas_call(
        functools.partial(_combine_kernel, num_meta=M),
        grid=(nt2,),
        in_specs=[
            pl.BlockSpec(memory_space=pltpu.MemorySpace.SMEM),   # beta scalars
            pl.BlockSpec((M, tn2, D), lambda i: (0, i, 0)),
            pl.BlockSpec((D, out_size), lambda i: (0, 0)),
            pl.BlockSpec((1, out_size), lambda i: (0, 0)),
        ],
        out_specs=(
            pl.BlockSpec((tn2, D), lambda i: (i, 0)),
            pl.BlockSpec((tn2, out_size), lambda i: (i, 0)),
        ),
        out_shape=(
            jax.ShapeDtypeStruct((N, D), z.dtype),
            jax.ShapeDtypeStruct((N, out_size), jnp.float32),
        ),
        compiler_params=pltpu.CompilerParams(
            dimension_semantics=("parallel",),
            vmem_limit_bytes=vmem_limit(tn2, bytes2),
        ),
    )(beta, z, wp, bp)

    return h, y


if __name__ == "__main__":
    # HAN(in_size, hidden_size=32, out_size=8, num_heads=[4], dropout=0.6)
    hidden_size = 32
    num_heads = 4
    out_size = 8
    D = hidden_size * num_heads       # 128 = SemanticAttention in_size
    H = 64                            # SemanticAttention hidden_size (default)
    M = 3                             # number of usable meta-paths
    N = 777                           # target nodes (b_ids); exercises partial tile

    key = jax.random.PRNGKey(0)
    keys = jax.random.split(key, 6)

    # Per-metapath GAT embeddings (stand-in for gat_layers[...] output,
    # flattened over heads), metapath-major (M, N, D).
    z_f32 = jax.random.normal(keys[0], (M, N, D), dtype=jnp.float32)

    # SemanticAttention: Linear(D, H) (+bias), Tanh, Linear(H, 1, bias=False)
    w1 = jax.random.normal(keys[1], (D, H), dtype=jnp.float32) / jnp.sqrt(D)
    b1 = jax.random.normal(keys[2], (1, H), dtype=jnp.float32) * 0.01
    w2 = jax.random.normal(keys[3], (H, 1), dtype=jnp.float32) / jnp.sqrt(H)

    # HAN.predict: Linear(hidden_size * num_heads[-1], out_size)
    wp = jax.random.normal(keys[4], (D, out_size), dtype=jnp.float32) / jnp.sqrt(D)
    bp = jax.random.normal(keys[5], (1, out_size), dtype=jnp.float32) * 0.01

    def reference(z_in):
        zf = z_in.astype(jnp.float32)
        s = jnp.tanh(zf @ w1 + b1) @ w2           # (M, N, 1)
        w_mean = s.mean(axis=1)                   # (M, 1) == torch .mean(0)
        beta = jax.nn.softmax(w_mean, axis=0)     # softmax over metapaths
        h_ref = jnp.einsum("m,mnd->nd", beta[:, 0], zf)
        y_ref = h_ref @ wp + bp
        return h_ref, y_ref

    # float32 z path; small tile so the grid has several steps + partial tile.
    # (tolerance 1e-2: the pass-1 projection matmul intentionally runs in bf16;
    # its error only perturbs the softmax-over-3-metapaths weights slightly.)
    h, y = han_forward(z_f32, w1, b1, w2, wp, bp, tile_n=256)
    jax.block_until_ready((h, y))
    h_ref, y_ref = reference(z_f32)
    assert jnp.allclose(h, h_ref, atol=1e-2, rtol=1e-2), "f32 semantic attention mismatch"
    assert jnp.allclose(y, y_ref, atol=1e-2, rtol=1e-2), "f32 predict mismatch"

    # bfloat16 z path (halves HBM traffic of the memory-bound streaming passes),
    # default (large) tile size.
    z_bf16 = z_f32.astype(jnp.bfloat16)
    h_b, y_b = han_forward(z_bf16, w1, b1, w2, wp, bp)
    jax.block_until_ready((h_b, y_b))
    h_ref_b, y_ref_b = reference(z_bf16)
    assert jnp.allclose(h_b.astype(jnp.float32), h_ref_b, atol=5e-2, rtol=5e-2), \
        "bf16 semantic attention mismatch"
    assert jnp.allclose(y_b, y_ref_b, atol=5e-2, rtol=5e-2), "bf16 predict mismatch"

    print("KERNEL_OK")
</pallas_src>

<mosaic_0001>
module attributes {stable_mosaic.version = 11 : i64} {
  func.func @_logits_kernel(%arg0: i32, %arg1: memref<3x256x128xf32, #tpu.memory_space<vmem>>, %arg2: memref<128x128xbf16, #tpu.memory_space<vmem>>, %arg3: memref<1x128xf32, #tpu.memory_space<vmem>>, %arg4: memref<1x128xf32, #tpu.memory_space<vmem>>, %arg5: memref<1x1x128xf32, #tpu.memory_space<vmem>>) attributes {dimension_semantics = [#tpu.dimension_semantics<parallel>], iteration_bounds = array<i64: 4>, scalar_prefetch = 0 : i64, scratch_operands = 0 : i64, tpu.core_type = #tpu.core_type<tc>, window_params = [{transform_indices = @transform_0, window_bounds = array<i64: 3, 256, 128>}, {pipeline_mode = #tpu.pipeline_mode<synchronous>, transform_indices = @transform_1, window_bounds = array<i64: 128, 128>}, {pipeline_mode = #tpu.pipeline_mode<synchronous>, transform_indices = @transform_2, window_bounds = array<i64: 1, 128>}, {pipeline_mode = #tpu.pipeline_mode<synchronous>, transform_indices = @transform_3, window_bounds = array<i64: 1, 128>}, {transform_indices = @transform_4, window_bounds = array<i64: 1, 1, 128>}]} {
    %c0 = arith.constant 0 : index
    %c0_0 = arith.constant 0 : index
    %c0_1 = arith.constant 0 : index
    %0 = vector.load %arg1[%c0, %c0_0, %c0_1] : memref<3x256x128xf32, #tpu.memory_space<vmem>>, vector<3x256x128xf32>
    %1 = vector.shape_cast %0 : vector<3x256x128xf32> to vector<768x128xf32>
    %2 = arith.truncf %1 : vector<768x128xf32> to vector<768x128xbf16>
    %c0_2 = arith.constant 0 : index
    %c0_3 = arith.constant 0 : index
    %3 = vector.load %arg2[%c0_2, %c0_3] : memref<128x128xbf16, #tpu.memory_space<vmem>>, vector<128x128xbf16>
    %cst = arith.constant dense<0.000000e+00> : vector<768x128xf32>
    %4 = tpu.matmul %2, %3, %cst {dimension_numbers = #tpu.dot_dimension_numbers<[1], [0], [0], [1], [0, 0, 1, 1], [], []>} : vector<768x128xbf16>, vector<128x128xbf16>, vector<768x128xf32> -> vector<768x128xf32>
    %c0_4 = arith.constant 0 : index
    %c0_5 = arith.constant 0 : index
    %5 = vector.load %arg3[%c0_4, %c0_5] : memref<1x128xf32, #tpu.memory_space<vmem>>, vector<1x128xf32>
    %6 = vector.broadcast %5 : vector<1x128xf32> to vector<768x128xf32>
    %7 = arith.addf %4, %6 : vector<768x128xf32>
    %8 = math.tanh %7 : vector<768x128xf32>
    %c0_6 = arith.constant 0 : index
    %c0_7 = arith.constant 0 : index
    %9 = vector.load %arg4[%c0_6, %c0_7] : memref<1x128xf32, #tpu.memory_space<vmem>>, vector<1x128xf32>
    %10 = vector.broadcast %9 : vector<1x128xf32> to vector<768x128xf32>
    %11 = arith.mulf %8, %10 : vector<768x128xf32>
    %cst_8 = arith.constant dense<0.000000e+00> : vector<768xf32>
    %12 = vector.multi_reduction <add>, %11, %cst_8 [1] : vector<768x128xf32> to vector<768xf32>
    %13 = vector.shape_cast %12 : vector<768xf32> to vector<768x1xf32>
    %14 = tpu.iota {dimensions = array<i32: 0>} : vector<256x1xi32>
    %c256_i32 = arith.constant 256 : i32
    %15 = arith.muli %arg0, %c256_i32 : i32
    %16 = vector.broadcast %15 : i32 to vector<256x1xi32>
    %17 = arith.addi %16, %14 : vector<256x1xi32>
    %c777_i32 = arith.constant 777 : i32
    %18 = vector.broadcast %c777_i32 : i32 to vector<256x1xi32>
    %19 = arith.cmpi slt, %17, %18 : vector<256x1xi32>
    %20 = tpu.iota {dimensions = array<i32: 2>} : vector<1x1x128xi32>
    %cst_9 = arith.constant 0.000000e+00 : f32
    %21 = vector.broadcast %cst_9 : f32 to vector<1x1x128xf32>
    %22 = vector.extract_strided_slice %13 {offsets = [0, 0], sizes = [256, 1], strides = [1, 1]} : vector<768x1xf32> to vector<256x1xf32>
    %cst_10 = arith.constant 0.000000e+00 : f32
    %23 = vector.broadcast %cst_10 : f32 to vector<256x1xf32>
    %24 = arith.select %19, %22, %23 : vector<256x1xi1>, vector<256x1xf32>
    %25 = vector.shape_cast %24 : vector<256x1xf32> to vector<1x256x1xf32>
    %cst_11 = arith.constant dense<0.000000e+00> : vector<1xf32>
    %26 = vector.multi_reduction <add>, %25, %cst_11 [1, 2] : vector<1x256x1xf32> to vector<1xf32>
    %27 = vector.shape_cast %26 : vector<1xf32> to vector<1x1x1xf32>
    %28 = vector.extract %27[0, 0, 0] : f32 from vector<1x1x1xf32>
    %c0_i32 = arith.constant 0 : i32
    %29 = vector.broadcast %c0_i32 : i32 to vector<1x1x128xi32>
    %30 = arith.cmpi eq, %20, %29 : vector<1x1x128xi32>
    %cst_12 = arith.constant 0.000000e+00 : f32
    %31 = vector.broadcast %28 : f32 to vector<1x1x128xf32>
    %32 = vector.broadcast %cst_12 : f32 to vector<1x1x128xf32>
    %33 = arith.select %30, %31, %32 : vector<1x1x128xi1>, vector<1x1x128xf32>
    %34 = arith.addf %21, %33 : vector<1x1x128xf32>
    %35 = vector.extract_strided_slice %13 {offsets = [256, 0], sizes = [256, 1], strides = [1, 1]} : vector<768x1xf32> to vector<256x1xf32>
    %cst_13 = arith.constant 0.000000e+00 : f32
    %36 = vector.broadcast %cst_13 : f32 to vector<256x1xf32>
    %37 = arith.select %19, %35, %36 : vector<256x1xi1>, vector<256x1xf32>
    %38 = vector.shape_cast %37 : vector<256x1xf32> to vector<1x256x1xf32>
    %cst_14 = arith.constant dense<0.000000e+00> : vector<1xf32>
    %39 = vector.multi_reduction <add>, %38, %cst_14 [1, 2] : vector<1x256x1xf32> to vector<1xf32>
    %40 = vector.shape_cast %39 : vector<1xf32> to vector<1x1x1xf32>
    %41 = vector.extract %40[0, 0, 0] : f32 from vector<1x1x1xf32>
    %c1_i32 = arith.constant 1 : i32
    %42 = vector.broadcast %c1_i32 : i32 to vector<1x1x128xi32>
    %43 = arith.cmpi eq, %20, %42 : vector<1x1x128xi32>
    %cst_15 = arith.constant 0.000000e+00 : f32
    %44 = vector.broadcast %41 : f32 to vector<1x1x128xf32>
    %45 = vector.broadcast %cst_15 : f32 to vector<1x1x128xf32>
    %46 = arith.select %43, %44, %45 : vector<1x1x128xi1>, vector<1x1x128xf32>
    %47 = arith.addf %34, %46 : vector<1x1x128xf32>
    %48 = vector.extract_strided_slice %13 {offsets = [512, 0], sizes = [256, 1], strides = [1, 1]} : vector<768x1xf32> to vector<256x1xf32>
    %cst_16 = arith.constant 0.000000e+00 : f32
    %49 = vector.broadcast %cst_16 : f32 to vector<256x1xf32>
    %50 = arith.select %19, %48, %49 : vector<256x1xi1>, vector<256x1xf32>
    %51 = vector.shape_cast %50 : vector<256x1xf32> to vector<1x256x1xf32>
    %cst_17 = arith.constant dense<0.000000e+00> : vector<1xf32>
    %52 = vector.multi_reduction <add>, %51, %cst_17 [1, 2] : vector<1x256x1xf32> to vector<1xf32>
    %53 = vector.shape_cast %52 : vector<1xf32> to vector<1x1x1xf32>
    %54 = vector.extract %53[0, 0, 0] : f32 from vector<1x1x1xf32>
    %c2_i32 = arith.constant 2 : i32
    %55 = vector.broadcast %c2_i32 : i32 to vector<1x1x128xi32>
    %56 = arith.cmpi eq, %20, %55 : vector<1x1x128xi32>
    %cst_18 = arith.constant 0.000000e+00 : f32
    %57 = vector.broadcast %54 : f32 to vector<1x1x128xf32>
    %58 = vector.broadcast %cst_18 : f32 to vector<1x1x128xf32>
    %59 = arith.select %56, %57, %58 : vector<1x1x128xi1>, vector<1x1x128xf32>
    %60 = arith.addf %47, %59 : vector<1x1x128xf32>
    %c0_19 = arith.constant 0 : index
    %c0_20 = arith.constant 0 : index
    %c0_21 = arith.constant 0 : index
    %61 = vector.load %arg5[%c0_19, %c0_20, %c0_21] : memref<1x1x128xf32, #tpu.memory_space<vmem>>, vector<1x1x128xf32>
    tpu.vector_store %arg5[%c0_19, %c0_20, %c0_21], %60 {strides = array<i32>} : memref<1x1x128xf32, #tpu.memory_space<vmem>>, vector<1x1x128xf32>,
    return
  }
  func.func @transform_0(%arg0: i32) -> (i32, i32, i32) {
    %c0_i32 = arith.constant 0 : i32
    %c0_i32_0 = arith.constant 0 : i32
    %c0_i32_1 = arith.constant 0 : i32
    return %c0_i32, %arg0, %c0_i32_0 : i32, i32, i32
  }
  func.func @transform_1(%arg0: i32) -> (i32, i32) {
    %c0_i32 = arith.constant 0 : i32
    %c0_i32_0 = arith.constant 0 : i32
    %c0_i32_1 = arith.constant 0 : i32
    return %c0_i32, %c0_i32_0 : i32, i32
  }
  func.func @transform_2(%arg0: i32) -> (i32, i32) {
    %c0_i32 = arith.constant 0 : i32
    %c0_i32_0 = arith.constant 0 : i32
    %c0_i32_1 = arith.constant 0 : i32
    return %c0_i32, %c0_i32_0 : i32, i32
  }
  func.func @transform_3(%arg0: i32) -> (i32, i32) {
    %c0_i32 = arith.constant 0 : i32
    %c0_i32_0 = arith.constant 0 : i32
    %c0_i32_1 = arith.constant 0 : i32
    return %c0_i32, %c0_i32_0 : i32, i32
  }
  func.func @transform_4(%arg0: i32) -> (i32, i32, i32) {
    %c0_i32 = arith.constant 0 : i32
    %c0_i32_0 = arith.constant 0 : i32
    %c0_i32_1 = arith.constant 0 : i32
    return %arg0, %c0_i32, %c0_i32_0 : i32, i32, i32
  }
}

</mosaic_0001>

<llo_original>
// kernel: tpu_custom_call.1
$region0: #{tpu_custom_call.1}
  #allocation0 [shape = 'u32[]', space=smem, size = 0x4, offset = 0x4, fixed_abs, tag = 'smem constant byte address 0x4 - core index']
  #allocation1 [shape = 'u32[144,128]{1,0:T(1,128)}', space=vmem, size = 0x12000, scoped, tag = 'internal scratch']
  #allocation11 [shape = 's32[]', space=sflag, size = 0x4, offset = 0, fixed_abs, tag = 'sflag constant byte address 0x0 - dummy sync flag']
  %s0 = inlined_call_operand.hbm [shape: f32[3,777,128], index: 0, kind: input, shape index: {}]
  %s1 = inlined_call_operand.hbm [shape: bf16[128,128], index: 1, kind: input, shape index: {}]
  %s2 = inlined_call_operand.hbm [shape: f32[1,128], index: 2, kind: input, shape index: {}]
  %s3 = inlined_call_operand.hbm [shape: f32[1,128], index: 3, kind: input, shape index: {}]
  %s4 = inlined_call_operand.hbm [shape: f32[4,1,128], index: 4, kind: output, shape index: {}]
  %s5 = sld [smem:[#allocation0]]
  $region65: #{tpu_custom_call.1} parent=0
    _
  %s7 = ssub.s32 1, %s5
  %s8 = scalar_select 0, %s7, %s5
  $region1: #{tpu_custom_call.1} parent=0
    #allocation2 [shape = 'u8[786432]{0}', space=vmem, size = 0xc0000, scoped, tag = 'input window, operand 0']
    #allocation3 [shape = 's32[2]{0}', space=sflag, size = 0x8, scoped, tag = 'scoped memory for tpu_custom_call.1']
    #allocation4 [shape = 's32[2]{0}', space=sflag, size = 0x8, scoped, tag = 'scoped memory for tpu_custom_call.1']
    #allocation5 [shape = 'u8[32768]{0}', space=vmem, size = 0x8000, scoped, tag = 'input window, operand 1, single buffered']
    #allocation6 [shape = 's32[1]{0}', space=sflag, size = 0x4, scoped, tag = 'scoped memory for tpu_custom_call.1']
    #allocation7 [shape = 'u8[512]{0}', space=vmem, size = 0x400, scoped, tag = 'input window, operand 2, single buffered']
    #allocation8 [shape = 'u8[512]{0}', space=vmem, size = 0x400, scoped, tag = 'input window, operand 3, single buffered']
    #allocation9 [shape = 's32[1]{0}', space=sflag, size = 0x4, scoped, tag = 'scoped memory for tpu_custom_call.1']
    #allocation10 [shape = 'u8[1024]{0}', space=vmem, size = 0x400, scoped, tag = 'output window, operand 0']
    %9 = vsyncpa [#allocation3], 0
    %s10 = scalar_lea.sflag [#allocation3], 1
    %11 = vsyncpa %s10, 0
    %12 = vsyncpa [#allocation6], 0
    %13 = vsyncpa [#allocation9], 0
    %14 = vsyncpa [#allocation4], 0
    %s15 = scalar_lea.sflag [#allocation4], 1
    %16 = vsyncpa %s15, 0
    loop: start=0, step=1, limit=6
    $region2: #{tpu_custom_call.1} parent=1 // loop_pre_header
      _
    $region3: #{tpu_custom_call.1} parent=1 // loop_header
      %s18 = sphi 0, %s22
      %p19 = scmp.ge.s32.totalorder %s18, 6
      %s28 = sphi 0, %s30
      %s31 = sphi 0, %s28
      %s32 = sphi 0, %s31
      %s48 = sphi 0, %s32
      %s52 = sphi 0, %s52
      %s54 = sphi 0, %s52
      %s55 = sphi 0, %s54
      %s69 = sphi 0, %s55
      %s73 = sphi 0, %s73
      %s75 = sphi 0, %s73
      %s76 = sphi 0, %s75
      %s90 = sphi 0, %s76
      %s94 = sphi 0, %s94
      %s96 = sphi 0, %s94
      %s97 = sphi 0, %s96
      %s111 = sphi 0, %s97
      %s117 = sphi 0, %s119
      %s120 = sphi 0, %s117
      %s121 = sphi 0, %s120
      %s137 = sphi 0, %s121
    $region4: #{tpu_custom_call.1} parent=1 // loop_header_branch
      %21 = sbr.rel (%p19) target = $region8
    $region5: #{tpu_custom_call.1} parent=1 // loop_body
      %s23 = ssub.s32 %s18, 1
      %s24 = ssub.s32 %s18, 2
      %s25 = sadd.s32 %s18, 1
      %s26 = ssub.s32 %s18, %s25
      %p27 = scmp.eq.s32.totalorder %s26, 0
      %s29 = sadd.s32 %s28, 1
      %s30 = scalar_select %p27, %s28, %s29
      %p33 = pneg %p27
      %p34 = scmp.eq.s32.totalorder %s18, 3
      %p35 = por %p33, %p34
      %p36 = scmp.ne.s32.totalorder %s28, %s31
      %p37 = scmp.eq.s32.totalorder %s18, 0
      %p38 = por %p36, %p37
      %p39 = scmp.ne.s32.totalorder %s28, %s31
      %p40 = scmp.eq.s32.totalorder %s23, 3
      %p41 = por %p39, %p40
      %p42 = scmp.ne.s32.totalorder %s31, %s32
      %p43 = scmp.eq.s32.totalorder %s23, 0
      %p44 = por %p42, %p43
      %p45 = scmp.ne.s32.totalorder %s31, %s32
      %p46 = scmp.eq.s32.totalorder %s24, 3
      %p47 = por %p45, %p46
      %p49 = scmp.ne.s32.totalorder %s32, %s48
      %p50 = scmp.eq.s32.totalorder %s24, 0
      %p51 = por %p49, %p50
      %s53 = sadd.s32 %s52, 1
      %p56 = scmp.eq.s32.totalorder %s18, 3
      %p57 = scmp.ne.s32.totalorder %s52, %s54
      %p58 = scmp.eq.s32.totalorder %s18, 0
      %p59 = por %p57, %p58
      %p60 = scmp.ne.s32.totalorder %s52, %s54
      %p61 = scmp.eq.s32.totalorder %s23, 3
      %p62 = por %p60, %p61
      %p63 = scmp.ne.s32.totalorder %s54, %s55
      %p64 = scmp.eq.s32.totalorder %s23, 0
      %p65 = por %p63, %p64
      %p66 = scmp.ne.s32.totalorder %s54, %s55
      %p67 = scmp.eq.s32.totalorder %s24, 3
      %p68 = por %p66, %p67
      %p70 = scmp.ne.s32.totalorder %s55, %s69
      %p71 = scmp.eq.s32.totalorder %s24, 0
      %p72 = por %p70, %p71
      %s74 = sadd.s32 %s73, 1
      %p77 = scmp.eq.s32.totalorder %s18, 3
      %p78 = scmp.ne.s32.totalorder %s73, %s75
      %p79 = scmp.eq.s32.totalorder %s18, 0
      %p80 = por %p78, %p79
      %p81 = scmp.ne.s32.totalorder %s73, %s75
      %p82 = scmp.eq.s32.totalorder %s23, 3
      %p83 = por %p81, %p82
      %p84 = scmp.ne.s32.totalorder %s75, %s76
      %p85 = scmp.eq.s32.totalorder %s23, 0
      %p86 = por %p84, %p85
      %p87 = scmp.ne.s32.totalorder %s75, %s76
      %p88 = scmp.eq.s32.totalorder %s24, 3
      %p89 = por %p87, %p88
      %p91 = scmp.ne.s32.totalorder %s76, %s90
      %p92 = scmp.eq.s32.totalorder %s24, 0
      %p93 = por %p91, %p92
      %s95 = sadd.s32 %s94, 1
      %p98 = scmp.eq.s32.totalorder %s18, 3
      %p99 = scmp.ne.s32.totalorder %s94, %s96
      %p100 = scmp.eq.s32.totalorder %s18, 0
      %p101 = por %p99, %p100
      %p102 = scmp.ne.s32.totalorder %s94, %s96
      %p103 = scmp.eq.s32.totalorder %s23, 3
      %p104 = por %p102, %p103
      %p105 = scmp.ne.s32.totalorder %s96, %s97
      %p106 = scmp.eq.s32.totalorder %s23, 0
      %p107 = por %p105, %p106
      %p108 = scmp.ne.s32.totalorder %s96, %s97
      %p109 = scmp.eq.s32.totalorder %s24, 3
      %p110 = por %p108, %p109
      %p112 = scmp.ne.s32.totalorder %s97, %s111
      %p113 = scmp.eq.s32.totalorder %s24, 0
      %p114 = por %p112, %p113
      %s115 = ssub.s32 %s18, %s25
      %p116 = scmp.eq.s32.totalorder %s115, 0
      %s118 = sadd.s32 %s117, 1
      %s119 = scalar_select %p116, %s117, %s118
      %p122 = pneg %p116
      %p123 = scmp.eq.s32.totalorder %s18, 3
      %p124 = por %p122, %p123
      %p125 = scmp.ne.s32.totalorder %s117, %s120
      %p126 = scmp.eq.s32.totalorder %s18, 0
      %p127 = por %p125, %p126
      %p128 = scmp.ne.s32.totalorder %s117, %s120
      %p129 = scmp.eq.s32.totalorder %s23, 3
      %p130 = por %p128, %p129
      %p131 = scmp.ne.s32.totalorder %s120, %s121
      %p132 = scmp.eq.s32.totalorder %s23, 0
      %p133 = por %p131, %p132
      %p134 = scmp.ne.s32.totalorder %s120, %s121
      %p135 = scmp.eq.s32.totalorder %s24, 3
      %p136 = por %p134, %p135
      %p138 = scmp.ne.s32.totalorder %s121, %s137
      %p139 = scmp.eq.s32.totalorder %s24, 0
      %p140 = por %p138, %p139
      %p141 = scmp.le.s32.totalorder 1, %s18
      %p142 = scmp.lt.s32.totalorder %s18, 5
      %p143 = pnand %p141, %p142
      %p144 = pneg %p143
      // Predicated region
      $region9: #{tpu_custom_call.1} parent=5 // pred_check
        _
      $region10: #{tpu_custom_call.1} parent=5 // pred_check_branch
        %146 = sbr.rel (%p143) target = $region12
      $region11: #{tpu_custom_call.1} parent=5 // pred_region
        %s147 = ssub.s32 %s18, 1
        // Predicated region
        $region13: #{tpu_custom_call.1} parent=11 // pred_check
          %p148 = pneg %p65
        $region14: #{tpu_custom_call.1} parent=11 // pred_check_branch
          %150 = sbr.rel (%p148) target = $region16
        $region15: #{tpu_custom_call.1} parent=11 // pred_region
          %s152 = ssub.s32 1024, 1024
          %153 = vsyncadd [#allocation6], %s152
          %s154 = sshll.u32 [#allocation5], 4
          %s155 = int_to_ptr.vmem [resolvable:$true] %s154
          %160 = dma.hbm_to_vmem [thread:$0]  %s1, 1024, %s155, [#allocation6], 64, 64, 4
        $region16: #{tpu_custom_call.1} parent=11 // pred_fallthru
          _
        // Predicated region
        $region17: #{tpu_custom_call.1} parent=11 // pred_check
          %p161 = pneg %p86
        $region18: #{tpu_custom_call.1} parent=11 // pred_check_branch
          %163 = sbr.rel (%p161) target = $region20
        $region19: #{tpu_custom_call.1} parent=11 // pred_region
          %s165 = ssub.s32 16, 16
          %166 = vsyncadd [#allocation6], %s165
          %s168 = sshll.u32 [#allocation7], 4
          %s169 = int_to_ptr.vmem [resolvable:$true] %s168
          %171 = dma.hbm_to_vmem [thread:$0]  %s2, 16, %s169, [#allocation6]
        $region20: #{tpu_custom_call.1} parent=11 // pred_fallthru
          _
        // Predicated region
        $region21: #{tpu_custom_call.1} parent=11 // pred_check
          %p172 = pneg %p107
        $region22: #{tpu_custom_call.1} parent=11 // pred_check_branch
          %174 = sbr.rel (%p172) target = $region24
        $region23: #{tpu_custom_call.1} parent=11 // pred_region
          %s176 = ssub.s32 16, 16
          %177 = vsyncadd [#allocation9], %s176
          %s179 = sshll.u32 [#allocation8], 4
          %s180 = int_to_ptr.vmem [resolvable:$true] %s179
          %182 = dma.hbm_to_vmem [thread:$0]  %s3, 16, %s180, [#allocation9]
        $region24: #{tpu_custom_call.1} parent=11 // pred_fallthru
          _
      $region12: #{tpu_custom_call.1} parent=5 // pred_fallthru
        _
      %p183 = scmp.lt.s32.totalorder %s18, 4
      // Predicated region
      $region25: #{tpu_custom_call.1} parent=5 // pred_check
        %p184 = pneg %p183
      $region26: #{tpu_custom_call.1} parent=5 // pred_check_branch
        %186 = sbr.rel (%p184) target = $region28
      $region27: #{tpu_custom_call.1} parent=5 // pred_region
        // Predicated region
        $region29: #{tpu_custom_call.1} parent=27 // pred_check
          %p187 = pneg %p38
        $region30: #{tpu_custom_call.1} parent=27 // pred_check_branch
          %189 = sbr.rel (%p187) target = $region32
        $region31: #{tpu_custom_call.1} parent=27 // pred_region
          #allocation12 [shape = 'u32[6]{0}', space=smem, size = 0x18, scoped, tag = 'DMA stride descriptor']
          %s190 = sand.u32 %s28, 1
          %s191 = scalar_lea.sflag [#allocation3], %s190
          %s192 = sand.u32 %s28, 1
          %s193 = smul.addr %s192, 768
          %s194 = scalar_lea.vmem [#allocation2], %s193
          %s195 = smul.u32 32, %s18
          %s196 = ssub.s32 98, %s195
          %p197 = scmp.lt.s32.totalorder %s196, 32
          %s198 = scalar_select %p197, %s196, 32
          %s199 = smul.u32 384, %s198
          %s201 = ssub.s32 12288, %s199
          %202 = vsyncadd %s191, %s201
          %p203 = scmp.ne.s32.totalorder 0, %s199
          %s204 = smul.addr %s195, 128
          %s205 = scalar_lea.hbm %s0, %s204
          %s206 = smul.u32 8, %s198
          %s207 = smul.u32 %s206, 3
          %s209 = sshll.u32 1, 14
          %s210 = sxor.u32 4294967295, %s209
          %s212 = sld [smem:[#allocation0]]
          %s213 = sadd.s32 2, %s212
          %s215 = sshll.u32 7, 26
          %s216 = sxor.u32 4294967295, %s215
          %s217 = sand.u32 0, %s216
          %s218 = sshll.u32 %s213, 26
          %s219 = sor.u32 %s217, %s218
          %s220 = sshll.u32 %s194, 4
          %s221 = int_to_ptr.vmem [resolvable:$true] %s220
          %s222 = sshll.u32 %s207, 4
          %227 = sst [smem:[#allocation12]] 12544
          %s228 = scalar_lea.smem [#allocation12], 1
          %229 = sst [smem:[%s228]] 4096
          %s230 = scalar_lea.smem [#allocation12], 2
          %231 = sst [smem:[%s230]] %s198
          %s232 = scalar_lea.smem [#allocation12], 3
          %233 = sst [smem:[%s232]] 128
          %s234 = scalar_lea.smem [#allocation12], 4
          %235 = sst [smem:[%s234]] 128
          %s236 = scalar_lea.smem [#allocation12], 5
          %237 = sst [smem:[%s236]] 8
          %239 = dma.general (%p203), %s205, %s222, %s221, %s191, [#allocation11], [#allocation12], %s219, 0
        $region32: #{tpu_custom_call.1} parent=27 // pred_fallthru
          _
      $region28: #{tpu_custom_call.1} parent=5 // pred_fallthru
        _
      %p240 = scmp.le.s32.totalorder 1, %s18
      %p241 = scmp.lt.s32.totalorder %s18, 5
      %p242 = pnand %p240, %p241
      %p243 = pneg %p242
      // Predicated region
      $region33: #{tpu_custom_call.1} parent=5 // pred_check
        _
      $region34: #{tpu_custom_call.1} parent=5 // pred_check_branch
        %245 = sbr.rel (%p242) target = $region36
      $region35: #{tpu_custom_call.1} parent=5 // pred_region
        %s246 = ssub.s32 %s18, 1
        %s247 = sand.u32 %s31, 1
        %s248 = scalar_lea.sflag [#allocation3], %s247
        %s249 = sand.u32 %s31, 1
        %s250 = smul.addr %s249, 768
        %s251 = scalar_lea.vmem [#allocation2], %s250
        // Predicated region
        $region37: #{tpu_custom_call.1} parent=35 // pred_check
          %p252 = pneg %p44
        $region38: #{tpu_custom_call.1} parent=35 // pred_check_branch
          %254 = sbr.rel (%p252) target = $region40
        $region39: #{tpu_custom_call.1} parent=35 // pred_region
          %255 = dma.done %s248, 12288
        $region40: #{tpu_custom_call.1} parent=35 // pred_fallthru
          _
        // Predicated region
        $region41: #{tpu_custom_call.1} parent=35 // pred_check
          %p256 = pneg %p65
        $region42: #{tpu_custom_call.1} parent=35 // pred_check_branch
          %258 = sbr.rel (%p256) target = $region44
        $region43: #{tpu_custom_call.1} parent=35 // pred_region
          %259 = dma.done [#allocation6], 1024
        $region44: #{tpu_custom_call.1} parent=35 // pred_fallthru
          _
        // Predicated region
        $region45: #{tpu_custom_call.1} parent=35 // pred_check
          %p260 = pneg %p86
        $region46: #{tpu_custom_call.1} parent=35 // pred_check_branch
          %262 = sbr.rel (%p260) target = $region48
        $region47: #{tpu_custom_call.1} parent=35 // pred_region
          %263 = dma.done [#allocation6], 16
        $region48: #{tpu_custom_call.1} parent=35 // pred_fallthru
          _
        // Predicated region
        $region49: #{tpu_custom_call.1} parent=35 // pred_check
          %p264 = pneg %p107
        $region50: #{tpu_custom_call.1} parent=35 // pred_check_branch
          %266 = sbr.rel (%p264) target = $region52
        $region51: #{tpu_custom_call.1} parent=35 // pred_region
          %267 = dma.done [#allocation9], 16
        $region52: #{tpu_custom_call.1} parent=35 // pred_fallthru
          _
        %s268 = sand.u32 %s31, 1
        %s269 = scalar_lea.sflag [#allocation3], %s268
        %s270 = sand.u32 %s31, 1
        %s271 = smul.addr %s270, 768
        %s272 = scalar_lea.vmem [#allocation2], %s271
        %p273 = pneg %p44
        %p274 = pneg %p41
        %p275 = pneg %p65
        %p276 = pneg %p62
        %p277 = pneg %p86
        %p278 = pneg %p83
        %p279 = pneg %p107
        %p280 = pneg %p104
        %p281 = pneg %p133
        %p282 = pneg %p130
        %s283 = sand.u32 %s120, 1
        %s284 = scalar_lea.sflag [#allocation4], %s283
        %s285 = sand.u32 %s120, 1
        %s286 = scalar_lea.vmem [#allocation10], %s285
        %s287 = smul.u32 32, %s23
        %s288 = ssub.s32 98, %s287
        %p289 = scmp.lt.s32.totalorder %s288, 32
        %s290 = scalar_select %p289, %s288, 32
        %s291 = smul.u32 384, %s290
        %v293 = vld [vmem:[%s251] sm:$0xff]
        %v294 = vld [vmem:[%s251 + $0x8] sm:$0xff]
        %v295 = vld [vmem:[%s251 + $0x10] sm:$0xff]
        %v296 = vld [vmem:[%s251 + $0x18] sm:$0xff]
        %v297 = vld [vmem:[%s251 + $0x20] sm:$0xff]
        %v298 = vld [vmem:[%s251 + $0x28] sm:$0xff]
        %v299 = vld [vmem:[%s251 + $0x30] sm:$0xff]
        %v300 = vld [vmem:[%s251 + $0x38] sm:$0xff]
        %v301 = vld [vmem:[%s251 + $0x40] sm:$0xff]
        %v302 = vld [vmem:[%s251 + $0x48] sm:$0xff]
        %v303 = vld [vmem:[%s251 + $0x50] sm:$0xff]
        %v304 = vld [vmem:[%s251 + $0x58] sm:$0xff]
        %v305 = vld [vmem:[%s251 + $0x60] sm:$0xff]
        %v306 = vld [vmem:[%s251 + $0x68] sm:$0xff]
        %v307 = vld [vmem:[%s251 + $0x70] sm:$0xff]
        %v308 = vld [vmem:[%s251 + $0x78] sm:$0xff]
        %v309 = vld [vmem:[%s251 + $0x80] sm:$0xff]
        %v310 = vld [vmem:[%s251 + $0x88] sm:$0xff]
        %v311 = vld [vmem:[%s251 + $0x90] sm:$0xff]
        %v312 = vld [vmem:[%s251 + $0x98] sm:$0xff]
        %v313 = vld [vmem:[%s251 + $0xa0] sm:$0xff]
        %v314 = vld [vmem:[%s251 + $0xa8] sm:$0xff]
        %v315 = vld [vmem:[%s251 + $0xb0] sm:$0xff]
        %v316 = vld [vmem:[%s251 + $0xb8] sm:$0xff]
        %v317 = vld [vmem:[%s251 + $0xc0] sm:$0xff]
        %v318 = vld [vmem:[%s251 + $0xc8] sm:$0xff]
        %v319 = vld [vmem:[%s251 + $0xd0] sm:$0xff]
        %v320 = vld [vmem:[%s251 + $0xd8] sm:$0xff]
        %v321 = vld [vmem:[%s251 + $0xe0] sm:$0xff]
        %v322 = vld [vmem:[%s251 + $0xe8] sm:$0xff]
        %v323 = vld [vmem:[%s251 + $0xf0] sm:$0xff]
        %v324 = vld [vmem:[%s251 + $0xf8] sm:$0xff]
        %v325 = vld [vmem:[%s251 + $0x100] sm:$0xff]
        %v326 = vld [vmem:[%s251 + $0x108] sm:$0xff]
        %v327 = vld [vmem:[%s251 + $0x110] sm:$0xff]
        %v328 = vld [vmem:[%s251 + $0x118] sm:$0xff]
        %v329 = vld [vmem:[%s251 + $0x120] sm:$0xff]
        %v330 = vld [vmem:[%s251 + $0x128] sm:$0xff]
        %v331 = vld [vmem:[%s251 + $0x130] sm:$0xff]
        %v332 = vld [vmem:[%s251 + $0x138] sm:$0xff]
        %v333 = vld [vmem:[%s251 + $0x140] sm:$0xff]
        %v334 = vld [vmem:[%s251 + $0x148] sm:$0xff]
        %v335 = vld [vmem:[%s251 + $0x150] sm:$0xff]
        %v336 = vld [vmem:[%s251 + $0x158] sm:$0xff]
        %v337 = vld [vmem:[%s251 + $0x160] sm:$0xff]
        %v338 = vld [vmem:[%s251 + $0x168] sm:$0xff]
        %v339 = vld [vmem:[%s251 + $0x170] sm:$0xff]
        %v340 = vld [vmem:[%s251 + $0x178] sm:$0xff]
        %v341 = vld [vmem:[%s251 + $0x180] sm:$0xff]
        %v342 = vld [vmem:[%s251 + $0x188] sm:$0xff]
        %v343 = vld [vmem:[%s251 + $0x190] sm:$0xff]
        %v344 = vld [vmem:[%s251 + $0x198] sm:$0xff]
        %v345 = vld [vmem:[%s251 + $0x1a0] sm:$0xff]
        %v346 = vld [vmem:[%s251 + $0x1a8] sm:$0xff]
        %v347 = vld [vmem:[%s251 + $0x1b0] sm:$0xff]
        %v348 = vld [vmem:[%s251 + $0x1b8] sm:$0xff]
        %v349 = vld [vmem:[%s251 + $0x1c0] sm:$0xff]
        %v350 = vld [vmem:[%s251 + $0x1c8] sm:$0xff]
        %v351 = vld [vmem:[%s251 + $0x1d0] sm:$0xff]
        %v352 = vld [vmem:[%s251 + $0x1d8] sm:$0xff]
        %v353 = vld [vmem:[%s251 + $0x1e0] sm:$0xff]
        %v354 = vld [vmem:[%s251 + $0x1e8] sm:$0xff]
        %v355 = vld [vmem:[%s251 + $0x1f0] sm:$0xff]
        %v356 = vld [vmem:[%s251 + $0x1f8] sm:$0xff]
        %v357 = vld [vmem:[%s251 + $0x200] sm:$0xff]
        %v358 = vld [vmem:[%s251 + $0x208] sm:$0xff]
        %v359 = vld [vmem:[%s251 + $0x210] sm:$0xff]
        %v360 = vld [vmem:[%s251 + $0x218] sm:$0xff]
        %v361 = vld [vmem:[%s251 + $0x220] sm:$0xff]
        %v362 = vld [vmem:[%s251 + $0x228] sm:$0xff]
        %v363 = vld [vmem:[%s251 + $0x230] sm:$0xff]
        %v364 = vld [vmem:[%s251 + $0x238] sm:$0xff]
        %v365 = vld [vmem:[%s251 + $0x240] sm:$0xff]
        %v366 = vld [vmem:[%s251 + $0x248] sm:$0xff]
        %v367 = vld [vmem:[%s251 + $0x250] sm:$0xff]
        %v368 = vld [vmem:[%s251 + $0x258] sm:$0xff]
        %v369 = vld [vmem:[%s251 + $0x260] sm:$0xff]
        %v370 = vld [vmem:[%s251 + $0x268] sm:$0xff]
        %v371 = vld [vmem:[%s251 + $0x270] sm:$0xff]
        %v372 = vld [vmem:[%s251 + $0x278] sm:$0xff]
        %v373 = vld [vmem:[%s251 + $0x280] sm:$0xff]
        %v374 = vld [vmem:[%s251 + $0x288] sm:$0xff]
        %v375 = vld [vmem:[%s251 + $0x290] sm:$0xff]
        %v376 = vld [vmem:[%s251 + $0x298] sm:$0xff]
        %v377 = vld [vmem:[%s251 + $0x2a0] sm:$0xff]
        %v378 = vld [vmem:[%s251 + $0x2a8] sm:$0xff]
        %v379 = vld [vmem:[%s251 + $0x2b0] sm:$0xff]
        %v380 = vld [vmem:[%s251 + $0x2b8] sm:$0xff]
        %v381 = vld [vmem:[%s251 + $0x2c0] sm:$0xff]
        %v382 = vld [vmem:[%s251 + $0x2c8] sm:$0xff]
        %v383 = vld [vmem:[%s251 + $0x2d0] sm:$0xff]
        %v384 = vld [vmem:[%s251 + $0x2d8] sm:$0xff]
        %v385 = vld [vmem:[%s251 + $0x2e0] sm:$0xff]
        %v386 = vld [vmem:[%s251 + $0x2e8] sm:$0xff]
        %v387 = vld [vmem:[%s251 + $0x2f0] sm:$0xff]
        %v388 = vld [vmem:[%s251 + $0x2f8] sm:$0xff]
        %v389 = vpack.c.bf16 %v294, %v293
        %v390 = vpack.c.bf16 %v296, %v295
        %v391 = vpack.c.bf16 %v298, %v297
        %v392 = vpack.c.bf16 %v300, %v299
        %v393 = vpack.c.bf16 %v302, %v301
        %v394 = vpack.c.bf16 %v304, %v303
        %v395 = vpack.c.bf16 %v306, %v305
        %v396 = vpack.c.bf16 %v308, %v307
        %v397 = vpack.c.bf16 %v310, %v309
        %v398 = vpack.c.bf16 %v312, %v311
        %v399 = vpack.c.bf16 %v314, %v313
        %v400 = vpack.c.bf16 %v316, %v315
        %v401 = vpack.c.bf16 %v318, %v317
        %v402 = vpack.c.bf16 %v320, %v319
        %v403 = vpack.c.bf16 %v322, %v321
        %v404 = vpack.c.bf16 %v324, %v323
        %v405 = vpack.c.bf16 %v326, %v325
        %v406 = vpack.c.bf16 %v328, %v327
        %v407 = vpack.c.bf16 %v330, %v329
        %v408 = vpack.c.bf16 %v332, %v331
        %v409 = vpack.c.bf16 %v334, %v333
        %v410 = vpack.c.bf16 %v336, %v335
        %v411 = vpack.c.bf16 %v338, %v337
        %v412 = vpack.c.bf16 %v340, %v339
        %v413 = vpack.c.bf16 %v342, %v341
        %v414 = vpack.c.bf16 %v344, %v343
        %v415 = vpack.c.bf16 %v346, %v345
        %v416 = vpack.c.bf16 %v348, %v347
        %v417 = vpack.c.bf16 %v350, %v349
        %v418 = vpack.c.bf16 %v352, %v351
        %v419 = vpack.c.bf16 %v354, %v353
        %v420 = vpack.c.bf16 %v356, %v355
        %v421 = vpack.c.bf16 %v358, %v357
        %v422 = vpack.c.bf16 %v360, %v359
        %v423 = vpack.c.bf16 %v362, %v361
        %v424 = vpack.c.bf16 %v364, %v363
        %v425 = vpack.c.bf16 %v366, %v365
        %v426 = vpack.c.bf16 %v368, %v367
        %v427 = vpack.c.bf16 %v370, %v369
        %v428 = vpack.c.bf16 %v372, %v371
        %v429 = vpack.c.bf16 %v374, %v373
        %v430 = vpack.c.bf16 %v376, %v375
        %v431 = vpack.c.bf16 %v378, %v377
        %v432 = vpack.c.bf16 %v380, %v379
        %v433 = vpack.c.bf16 %v382, %v381
        %v434 = vpack.c.bf16 %v384, %v383
        %v435 = vpack.c.bf16 %v386, %v385
        %v436 = vpack.c.bf16 %v388, %v387
        %v437 = vld [vmem:[#allocation5] sm:$0xf]
        %v438 = vld [vmem:[#allocation5 + $0x4] sm:$0xf]
        %v439 = vld [vmem:[#allocation5 + $0x8] sm:$0xf]
        %v440 = vld [vmem:[#allocation5 + $0xc] sm:$0xf]
        %v441 = vld [vmem:[#allocation5 + $0x10] sm:$0xf]
        %v442 = vld [vmem:[#allocation5 + $0x14] sm:$0xf]
        %v443 = vld [vmem:[#allocation5 + $0x18] sm:$0xf]
        %v444 = vld [vmem:[#allocation5 + $0x1c] sm:$0xf]
        %v445 = vld [vmem:[#allocation5 + $0x20] sm:$0xf]
        %v446 = vld [vmem:[#allocation5 + $0x24] sm:$0xf]
        %v447 = vld [vmem:[#allocation5 + $0x28] sm:$0xf]
        %v448 = vld [vmem:[#allocation5 + $0x2c] sm:$0xf]
        %v449 = vld [vmem:[#allocation5 + $0x30] sm:$0xf]
        %v450 = vld [vmem:[#allocation5 + $0x34] sm:$0xf]
        %v451 = vld [vmem:[#allocation5 + $0x38] sm:$0xf]
        %v452 = vld [vmem:[#allocation5 + $0x3c] sm:$0xf]
        %v453 = vld [vmem:[#allocation7] sm:$0x1]
        %v455 = vlaneseq
        %v456 = vshrl.u32 %v455, 7
        %v457 = vsub.s32 0, %v456
        %v458 = vrot.slane %v453, %v457
        %v476 = vunpack.c.l.b16 %v437
        %v477 = vunpack.c.l.b16 %v438
        %v478 = vunpack.c.l.b16 %v439
        %v479 = vunpack.c.l.b16 %v440
        %v480 = vunpack.c.l.b16 %v441
        %v481 = vunpack.c.l.b16 %v442
        %v482 = vunpack.c.l.b16 %v443
        %v483 = vunpack.c.l.b16 %v444
        %v484 = vunpack.c.l.b16 %v445
        %v485 = vunpack.c.l.b16 %v446
        %v486 = vunpack.c.l.b16 %v447
        %v487 = vunpack.c.l.b16 %v448
        %v488 = vunpack.c.l.b16 %v449
        %v489 = vunpack.c.l.b16 %v450
        %v490 = vunpack.c.l.b16 %v451
        %v491 = vunpack.c.l.b16 %v452
        %v492 = vpack.c.b16 %v477, %v476
        %v493 = vpack.c.b16 %v479, %v478
        %v494 = vpack.c.b16 %v481, %v480
        %v495 = vpack.c.b16 %v483, %v482
        %v496 = vpack.c.b16 %v485, %v484
        %v497 = vpack.c.b16 %v487, %v486
        %v498 = vpack.c.b16 %v489, %v488
        %v499 = vpack.c.b16 %v491, %v490
        %508 = vmatprep.subr.bf16.mxu0 0
        %509 = vmatpush1.bf16.msra.mxu0 %v492
        %510 = vmatprep.subr.bf16.mxu0 0
        %511 = vmatpush1.bf16.msra.mxu0 %v493
        %512 = vmatprep.subr.bf16.mxu0 0
        %513 = vmatpush1.bf16.msra.mxu0 %v494
        %514 = vmatprep.subr.bf16.mxu0 0
        %515 = vmatpush1.bf16.msra.mxu0 %v495
        %516 = vmatprep.subr.bf16.mxu0 0
        %517 = vmatpush1.bf16.msra.mxu0 %v496
        %518 = vmatprep.subr.bf16.mxu0 0
        %519 = vmatpush1.bf16.msra.mxu0 %v497
        %520 = vmatprep.subr.bf16.mxu0 0
        %521 = vmatpush1.bf16.msra.mxu0 %v498
        %522 = vmatprep.subr.bf16.mxu0 0
        %523 = vmatpush1.bf16.msra.mxu0 %v499
        %524 = vmatprep.subr.bf16.mxu0 0
        %525 = vmatpush1.bf16.msra.mxu0 0
        %526 = vmatprep.subr.bf16.mxu0 0
        %527 = vmatpush1.bf16.msra.mxu0 0
        %528 = vmatprep.subr.bf16.mxu0 0
        %529 = vmatpush1.bf16.msra.mxu0 0
        %530 = vmatprep.subr.bf16.mxu0 0
        %531 = vmatpush1.bf16.msra.mxu0 0
        %532 = vmatprep.subr.bf16.mxu0 0
        %533 = vmatpush1.bf16.msra.mxu0 0
        %534 = vmatprep.subr.bf16.mxu0 0
        %535 = vmatpush1.bf16.msra.mxu0 0
        %536 = vmatprep.subr.bf16.mxu0 0
        %537 = vmatpush1.bf16.msra.mxu0 0
        %538 = vmatprep.subr.bf16.mxu0 0
        %539 = vmatpush1.bf16.msra.mxu0 0
        %540 = vmatprep.mubr.bf16.mxu0 0
        %541 = vmatmul.mubr.bf16.gmra.mrb[0].mxu0 %v389
        %v542 = vpop.f32.mrb[0].mxu0
        %v543 = vadd.f32 %v458, %v542
        %v544 = vpop.f32.mrb[0].mxu0
        %v545 = vpop.f32.mrb[0].mxu0
        %v546 = vadd.f32 %v458, %v545
        %v547 = vpop.f32.mrb[0].mxu0
        %548 = vmatprep.mubr.bf16.mxu0 0
        %549 = vmatmul.mubr.bf16.gmra.mrb[0].mxu0 %v390
        %v550 = vpop.f32.mrb[0].mxu0
        %v551 = vadd.f32 %v458, %v550
        %v552 = vpop.f32.mrb[0].mxu0
        %v553 = vpop.f32.mrb[0].mxu0
        %v554 = vadd.f32 %v458, %v553
        %v555 = vpop.f32.mrb[0].mxu0
        %556 = vmatprep.mubr.bf16.mxu0 0
        %557 = vmatmul.mubr.bf16.gmra.mrb[0].mxu0 %v391
        %v558 = vpop.f32.mrb[0].mxu0
        %v559 = vadd.f32 %v458, %v558
        %v560 = vpop.f32.mrb[0].mxu0
        %v561 = vpop.f32.mrb[0].mxu0
        %v562 = vadd.f32 %v458, %v561
        %v563 = vpop.f32.mrb[0].mxu0
        %564 = vmatprep.mubr.bf16.mxu0 0
        %565 = vmatmul.mubr.bf16.gmra.mrb[0].mxu0 %v392
        %v566 = vpop.f32.mrb[0].mxu0
        %v567 = vadd.f32 %v458, %v566
        %v568 = vpop.f32.mrb[0].mxu0
        %v569 = vpop.f32.mrb[0].mxu0
        %v570 = vadd.f32 %v458, %v569
        %v571 = vpop.f32.mrb[0].mxu0
        %572 = vmatprep.mubr.bf16.mxu0 0
        %573 = vmatmul.mubr.bf16.gmra.mrb[0].mxu0 %v393
        %v574 = vpop.f32.mrb[0].mxu0
        %v575 = vadd.f32 %v458, %v574
        %v576 = vpop.f32.mrb[0].mxu0
        %v577 = vpop.f32.mrb[0].mxu0
        %v578 = vadd.f32 %v458, %v577
        %v579 = vpop.f32.mrb[0].mxu0
        %580 = vmatprep.mubr.bf16.mxu0 0
        %581 = vmatmul.mubr.bf16.gmra.mrb[0].mxu0 %v394
        %v582 = vpop.f32.mrb[0].mxu0
        %v583 = vadd.f32 %v458, %v582
        %v584 = vpop.f32.mrb[0].mxu0
        %v585 = vpop.f32.mrb[0].mxu0
        %v586 = vadd.f32 %v458, %v585
        %v587 = vpop.f32.mrb[0].mxu0
        %588 = vmatprep.mubr.bf16.mxu0 0
        %589 = vmatmul.mubr.bf16.gmra.mrb[0].mxu0 %v395
        %v590 = vpop.f32.mrb[0].mxu0
        %v591 = vadd.f32 %v458, %v590
        %v592 = vpop.f32.mrb[0].mxu0
        %v593 = vpop.f32.mrb[0].mxu0
        %v594 = vadd.f32 %v458, %v593
        %v595 = vpop.f32.mrb[0].mxu0
        %596 = vmatprep.mubr.bf16.mxu0 0
        %597 = vmatmul.mubr.bf16.gmra.mrb[0].mxu0 %v396
        %v598 = vpop.f32.mrb[0].mxu0
        %v599 = vadd.f32 %v458, %v598
        %v600 = vpop.f32.mrb[0].mxu0
        %v601 = vpop.f32.mrb[0].mxu0
        %v602 = vadd.f32 %v458, %v601
        %v603 = vpop.f32.mrb[0].mxu0
        %604 = vmatprep.mubr.bf16.mxu0 0
        %605 = vmatmul.mubr.bf16.gmra.mrb[0].mxu0 %v397
        %v606 = vpop.f32.mrb[0].mxu0
        %v607 = vadd.f32 %v458, %v606
        %v608 = vpop.f32.mrb[0].mxu0
        %v609 = vpop.f32.mrb[0].mxu0
        %v610 = vadd.f32 %v458, %v609
        %v611 = vpop.f32.mrb[0].mxu0
        %612 = vmatprep.mubr.bf16.mxu0 0
        %613 = vmatmul.mubr.bf16.gmra.mrb[0].mxu0 %v398
        %v614 = vpop.f32.mrb[0].mxu0
        %v615 = vadd.f32 %v458, %v614
        %v616 = vpop.f32.mrb[0].mxu0
        %v617 = vpop.f32.mrb[0].mxu0
        %v618 = vadd.f32 %v458, %v617
        %v619 = vpop.f32.mrb[0].mxu0
        %620 = vmatprep.mubr.bf16.mxu0 0
        %621 = vmatmul.mubr.bf16.gmra.mrb[0].mxu0 %v399
        %v622 = vpop.f32.mrb[0].mxu0
        %v623 = vadd.f32 %v458, %v622
        %v624 = vpop.f32.mrb[0].mxu0
        %v625 = vpop.f32.mrb[0].mxu0
        %v626 = vadd.f32 %v458, %v625
        %v627 = vpop.f32.mrb[0].mxu0
        %628 = vmatprep.mubr.bf16.mxu0 0
        %629 = vmatmul.mubr.bf16.gmra.mrb[0].mxu0 %v400
        %v630 = vpop.f32.mrb[0].mxu0
        %v631 = vadd.f32 %v458, %v630
        %v632 = vpop.f32.mrb[0].mxu0
        %v633 = vpop.f32.mrb[0].mxu0
        %v634 = vadd.f32 %v458, %v633
        %v635 = vpop.f32.mrb[0].mxu0
        %636 = vmatprep.mubr.bf16.mxu0 0
        %637 = vmatmul.mubr.bf16.gmra.mrb[0].mxu0 %v401
        %v638 = vpop.f32.mrb[0].mxu0
        %v639 = vadd.f32 %v458, %v638
        %v640 = vpop.f32.mrb[0].mxu0
        %v641 = vpop.f32.mrb[0].mxu0
        %v642 = vadd.f32 %v458, %v641
        %v643 = vpop.f32.mrb[0].mxu0
        %644 = vmatprep.mubr.bf16.mxu0 0
        %645 = vmatmul.mubr.bf16.gmra.mrb[0].mxu0 %v402
        %v646 = vpop.f32.mrb[0].mxu0
        %v647 = vadd.f32 %v458, %v646
        %v648 = vpop.f32.mrb[0].mxu0
        %v649 = vpop.f32.mrb[0].mxu0
        %v650 = vadd.f32 %v458, %v649
        %v651 = vpop.f32.mrb[0].mxu0
        %652 = vmatprep.mubr.bf16.mxu0 0
        %653 = vmatmul.mubr.bf16.gmra.mrb[0].mxu0 %v403
        %v654 = vpop.f32.mrb[0].mxu0
        %v655 = vadd.f32 %v458, %v654
        %v656 = vpop.f32.mrb[0].mxu0
        %v657 = vpop.f32.mrb[0].mxu0
        %v658 = vadd.f32 %v458, %v657
        %v659 = vpop.f32.mrb[0].mxu0
        %660 = vmatprep.mubr.bf16.mxu0 0
        %661 = vmatmul.mubr.bf16.gmra.mrb[0].mxu0 %v404
        %v662 = vpop.f32.mrb[0].mxu0
        %v663 = vadd.f32 %v458, %v662
        %v664 = vpop.f32.mrb[0].mxu0
        %v665 = vpop.f32.mrb[0].mxu0
        %v666 = vadd.f32 %v458, %v665
        %v667 = vpop.f32.mrb[0].mxu0
        %668 = vmatprep.mubr.bf16.mxu0 0
        %669 = vmatmul.mubr.bf16.gmra.mrb[0].mxu0 %v405
        %v670 = vpop.f32.mrb[0].mxu0
        %v671 = vadd.f32 %v458, %v670
        %v672 = vpop.f32.mrb[0].mxu0
        %v673 = vpop.f32.mrb[0].mxu0
        %v674 = vadd.f32 %v458, %v673
        %v675 = vpop.f32.mrb[0].mxu0
        %676 = vmatprep.mubr.bf16.mxu0 0
        %677 = vmatmul.mubr.bf16.gmra.mrb[0].mxu0 %v406
        %v678 = vpop.f32.mrb[0].mxu0
        %v679 = vadd.f32 %v458, %v678
        %v680 = vpop.f32.mrb[0].mxu0
        %v681 = vpop.f32.mrb[0].mxu0
        %v682 = vadd.f32 %v458, %v681
        %v683 = vpop.f32.mrb[0].mxu0
        %684 = vmatprep.mubr.bf16.mxu0 0
        %685 = vmatmul.mubr.bf16.gmra.mrb[0].mxu0 %v407
        %v686 = vpop.f32.mrb[0].mxu0
        %v687 = vadd.f32 %v458, %v686
        %v688 = vpop.f32.mrb[0].mxu0
        %v689 = vpop.f32.mrb[0].mxu0
        %v690 = vadd.f32 %v458, %v689
        %v691 = vpop.f32.mrb[0].mxu0
        %692 = vmatprep.mubr.bf16.mxu0 0
        %693 = vmatmul.mubr.bf16.gmra.mrb[0].mxu0 %v408
        %v694 = vpop.f32.mrb[0].mxu0
        %v695 = vadd.f32 %v458, %v694
        %v696 = vpop.f32.mrb[0].mxu0
        %v697 = vpop.f32.mrb[0].mxu0
        %v698 = vadd.f32 %v458, %v697
        %v699 = vpop.f32.mrb[0].mxu0
        %700 = vmatprep.mubr.bf16.mxu0 0
        %701 = vmatmul.mubr.bf16.gmra.mrb[0].mxu0 %v409
        %v702 = vpop.f32.mrb[0].mxu0
        %v703 = vadd.f32 %v458, %v702
        %v704 = vpop.f32.mrb[0].mxu0
        %v705 = vpop.f32.mrb[0].mxu0
        %v706 = vadd.f32 %v458, %v705
        %v707 = vpop.f32.mrb[0].mxu0
        %708 = vmatprep.mubr.bf16.mxu0 0
        %709 = vmatmul.mubr.bf16.gmra.mrb[0].mxu0 %v410
        %v710 = vpop.f32.mrb[0].mxu0
        %v711 = vadd.f32 %v458, %v710
        %v712 = vpop.f32.mrb[0].mxu0
        %v713 = vpop.f32.mrb[0].mxu0
        %v714 = vadd.f32 %v458, %v713
        %v715 = vpop.f32.mrb[0].mxu0
        %716 = vmatprep.mubr.bf16.mxu0 0
        %717 = vmatmul.mubr.bf16.gmra.mrb[0].mxu0 %v411
        %v718 = vpop.f32.mrb[0].mxu0
        %v719 = vadd.f32 %v458, %v718
        %v720 = vpop.f32.mrb[0].mxu0
        %v721 = vpop.f32.mrb[0].mxu0
        %v722 = vadd.f32 %v458, %v721
        %v723 = vpop.f32.mrb[0].mxu0
        %724 = vmatprep.mubr.bf16.mxu0 0
        %725 = vmatmul.mubr.bf16.gmra.mrb[0].mxu0 %v412
        %v726 = vpop.f32.mrb[0].mxu0
        %v727 = vadd.f32 %v458, %v726
        %v728 = vpop.f32.mrb[0].mxu0
        %v729 = vpop.f32.mrb[0].mxu0
        %v730 = vadd.f32 %v458, %v729
        %v731 = vpop.f32.mrb[0].mxu0
        %732 = vmatprep.mubr.bf16.mxu0 0
        %733 = vmatmul.mubr.bf16.gmra.mrb[0].mxu0 %v413
        %v734 = vpop.f32.mrb[0].mxu0
        %v735 = vadd.f32 %v458, %v734
        %v736 = vpop.f32.mrb[0].mxu0
        %v737 = vpop.f32.mrb[0].mxu0
        %v738 = vadd.f32 %v458, %v737
        %v739 = vpop.f32.mrb[0].mxu0
        %740 = vmatprep.mubr.bf16.mxu0 0
        %741 = vmatmul.mubr.bf16.gmra.mrb[0].mxu0 %v414
        %v742 = vpop.f32.mrb[0].mxu0
        %v743 = vadd.f32 %v458, %v742
        %v744 = vpop.f32.mrb[0].mxu0
        %v745 = vpop.f32.mrb[0].mxu0
        %v746 = vadd.f32 %v458, %v745
        %v747 = vpop.f32.mrb[0].mxu0
        %748 = vmatprep.mubr.bf16.mxu0 0
        %749 = vmatmul.mubr.bf16.gmra.mrb[0].mxu0 %v415
        %v750 = vpop.f32.mrb[0].mxu0
        %v751 = vadd.f32 %v458, %v750
        %v752 = vpop.f32.mrb[0].mxu0
        %v753 = vpop.f32.mrb[0].mxu0
        %v754 = vadd.f32 %v458, %v753
        %v755 = vpop.f32.mrb[0].mxu0
        %756 = vmatprep.mubr.bf16.mxu0 0
        %757 = vmatmul.mubr.bf16.gmra.mrb[0].mxu0 %v416
        %v758 = vpop.f32.mrb[0].mxu0
        %v759 = vadd.f32 %v458, %v758
        %v760 = vpop.f32.mrb[0].mxu0
        %v761 = vpop.f32.mrb[0].mxu0
        %v762 = vadd.f32 %v458, %v761
        %v763 = vpop.f32.mrb[0].mxu0
        %764 = vmatprep.mubr.bf16.mxu0 0
        %765 = vmatmul.mubr.bf16.gmra.mrb[0].mxu0 %v417
        %v766 = vpop.f32.mrb[0].mxu0
        %v767 = vadd.f32 %v458, %v766
        %v768 = vpop.f32.mrb[0].mxu0
        %v769 = vpop.f32.mrb[0].mxu0
        %v770 = vadd.f32 %v458, %v769
        %v771 = vpop.f32.mrb[0].mxu0
        %772 = vmatprep.mubr.bf16.mxu0 0
        %773 = vmatmul.mubr.bf16.gmra.mrb[0].mxu0 %v418
        %v774 = vpop.f32.mrb[0].mxu0
        %v775 = vadd.f32 %v458, %v774
        %v776 = vpop.f32.mrb[0].mxu0
        %v777 = vpop.f32.mrb[0].mxu0
        %v778 = vadd.f32 %v458, %v777
        %v779 = vpop.f32.mrb[0].mxu0
        %780 = vmatprep.mubr.bf16.mxu0 0
        %781 = vmatmul.mubr.bf16.gmra.mrb[0].mxu0 %v419
        %v782 = vpop.f32.mrb[0].mxu0
        %v783 = vadd.f32 %v458, %v782
        %v784 = vpop.f32.mrb[0].mxu0
        %v785 = vpop.f32.mrb[0].mxu0
        %v786 = vadd.f32 %v458, %v785
        %v787 = vpop.f32.mrb[0].mxu0
        %788 = vmatprep.mubr.bf16.mxu0 0
        %789 = vmatmul.mubr.bf16.gmra.mrb[0].mxu0 %v420
        %v790 = vpop.f32.mrb[0].mxu0
        %v791 = vadd.f32 %v458, %v790
        %v792 = vpop.f32.mrb[0].mxu0
        %v793 = vpop.f32.mrb[0].mxu0
        %v794 = vadd.f32 %v458, %v793
        %v795 = vpop.f32.mrb[0].mxu0
        %796 = vmatprep.mubr.bf16.mxu0 0
        %797 = vmatmul.mubr.bf16.gmra.mrb[0].mxu0 %v421
        %v798 = vpop.f32.mrb[0].mxu0
        %v799 = vadd.f32 %v458, %v798
        %v800 = vpop.f32.mrb[0].mxu0
        %v801 = vpop.f32.mrb[0].mxu0
        %v802 = vadd.f32 %v458, %v801
        %v803 = vpop.f32.mrb[0].mxu0
        %804 = vmatprep.mubr.bf16.mxu0 0
        %805 = vmatmul.mubr.bf16.gmra.mrb[0].mxu0 %v422
        %v806 = vpop.f32.mrb[0].mxu0
        %v807 = vadd.f32 %v458, %v806
        %v808 = vpop.f32.mrb[0].mxu0
        %v809 = vpop.f32.mrb[0].mxu0
        %v810 = vadd.f32 %v458, %v809
        %v811 = vpop.f32.mrb[0].mxu0
        %812 = vmatprep.mubr.bf16.mxu0 0
        %813 = vmatmul.mubr.bf16.gmra.mrb[0].mxu0 %v423
        %v814 = vpop.f32.mrb[0].mxu0
        %v815 = vadd.f32 %v458, %v814
        %v816 = vpop.f32.mrb[0].mxu0
        %v817 = vpop.f32.mrb[0].mxu0
        %v818 = vadd.f32 %v458, %v817
        %v819 = vpop.f32.mrb[0].mxu0
        %820 = vmatprep.mubr.bf16.mxu0 0
        %821 = vmatmul.mubr.bf16.gmra.mrb[0].mxu0 %v424
        %v822 = vpop.f32.mrb[0].mxu0
        %v823 = vadd.f32 %v458, %v822
        %v824 = vpop.f32.mrb[0].mxu0
        %v825 = vpop.f32.mrb[0].mxu0
        %v826 = vadd.f32 %v458, %v825
        %v827 = vpop.f32.mrb[0].mxu0
        %828 = vmatprep.mubr.bf16.mxu0 0
        %829 = vmatmul.mubr.bf16.gmra.mrb[0].mxu0 %v425
        %v830 = vpop.f32.mrb[0].mxu0
        %v831 = vadd.f32 %v458, %v830
        %v832 = vpop.f32.mrb[0].mxu0
        %v833 = vpop.f32.mrb[0].mxu0
        %v834 = vadd.f32 %v458, %v833
        %v835 = vpop.f32.mrb[0].mxu0
        %836 = vmatprep.mubr.bf16.mxu0 0
        %837 = vmatmul.mubr.bf16.gmra.mrb[0].mxu0 %v426
        %v838 = vpop.f32.mrb[0].mxu0
        %v839 = vadd.f32 %v458, %v838
        %v840 = vpop.f32.mrb[0].mxu0
        %v841 = vpop.f32.mrb[0].mxu0
        %v842 = vadd.f32 %v458, %v841
        %v843 = vpop.f32.mrb[0].mxu0
        %844 = vmatprep.mubr.bf16.mxu0 0
        %845 = vmatmul.mubr.bf16.gmra.mrb[0].mxu0 %v427
        %v846 = vpop.f32.mrb[0].mxu0
        %v847 = vadd.f32 %v458, %v846
        %v848 = vpop.f32.mrb[0].mxu0
        %v849 = vpop.f32.mrb[0].mxu0
        %v850 = vadd.f32 %v458, %v849
        %v851 = vpop.f32.mrb[0].mxu0
        %852 = vmatprep.mubr.bf16.mxu0 0
        %853 = vmatmul.mubr.bf16.gmra.mrb[0].mxu0 %v428
        %v854 = vpop.f32.mrb[0].mxu0
        %v855 = vadd.f32 %v458, %v854
        %v856 = vpop.f32.mrb[0].mxu0
        %v857 = vpop.f32.mrb[0].mxu0
        %v858 = vadd.f32 %v458, %v857
        %v859 = vpop.f32.mrb[0].mxu0
        %860 = vmatprep.mubr.bf16.mxu0 0
        %861 = vmatmul.mubr.bf16.gmra.mrb[0].mxu0 %v429
        %v862 = vpop.f32.mrb[0].mxu0
        %v863 = vadd.f32 %v458, %v862
        %v864 = vpop.f32.mrb[0].mxu0
        %v865 = vpop.f32.mrb[0].mxu0
        %v866 = vadd.f32 %v458, %v865
        %v867 = vpop.f32.mrb[0].mxu0
        %868 = vmatprep.mubr.bf16.mxu0 0
        %869 = vmatmul.mubr.bf16.gmra.mrb[0].mxu0 %v430
        %v870 = vpop.f32.mrb[0].mxu0
        %v871 = vadd.f32 %v458, %v870
        %v872 = vpop.f32.mrb[0].mxu0
        %v873 = vpop.f32.mrb[0].mxu0
        %v874 = vadd.f32 %v458, %v873
        %v875 = vpop.f32.mrb[0].mxu0
        %876 = vmatprep.mubr.bf16.mxu0 0
        %877 = vmatmul.mubr.bf16.gmra.mrb[0].mxu0 %v431
        %v878 = vpop.f32.mrb[0].mxu0
        %v879 = vadd.f32 %v458, %v878
        %v880 = vpop.f32.mrb[0].mxu0
        %v881 = vpop.f32.mrb[0].mxu0
        %v882 = vadd.f32 %v458, %v881
        %v883 = vpop.f32.mrb[0].mxu0
        %884 = vmatprep.mubr.bf16.mxu0 0
        %885 = vmatmul.mubr.bf16.gmra.mrb[0].mxu0 %v432
        %v886 = vpop.f32.mrb[0].mxu0
        %v887 = vadd.f32 %v458, %v886
        %v888 = vpop.f32.mrb[0].mxu0
        %v889 = vpop.f32.mrb[0].mxu0
        %v890 = vadd.f32 %v458, %v889
        %v891 = vpop.f32.mrb[0].mxu0
        %892 = vmatprep.mubr.bf16.mxu0 0
        %893 = vmatmul.mubr.bf16.gmra.mrb[0].mxu0 %v433
        %v894 = vpop.f32.mrb[0].mxu0
        %v895 = vadd.f32 %v458, %v894
        %v896 = vpop.f32.mrb[0].mxu0
        %v897 = vpop.f32.mrb[0].mxu0
        %v898 = vadd.f32 %v458, %v897
        %v899 = vpop.f32.mrb[0].mxu0
        %900 = vmatprep.mubr.bf16.mxu0 0
        %901 = vmatmul.mubr.bf16.gmra.mrb[0].mxu0 %v434
        %v902 = vpop.f32.mrb[0].mxu0
        %v903 = vadd.f32 %v458, %v902
        %v904 = vpop.f32.mrb[0].mxu0
        %v905 = vpop.f32.mrb[0].mxu0
        %v906 = vadd.f32 %v458, %v905
        %v907 = vpop.f32.mrb[0].mxu0
        %908 = vmatprep.mubr.bf16.mxu0 0
        %909 = vmatmul.mubr.bf16.gmra.mrb[0].mxu0 %v435
        %v910 = vpop.f32.mrb[0].mxu0
        %v911 = vadd.f32 %v458, %v910
        %v912 = vpop.f32.mrb[0].mxu0
        %v913 = vpop.f32.mrb[0].mxu0
        %v914 = vadd.f32 %v458, %v913
        %v915 = vpop.f32.mrb[0].mxu0
        %916 = vmatprep.mubr.bf16.mxu0 0
        %917 = vmatmul.mubr.bf16.gmra.mrb[0].mxu0 %v436
        %v918 = vpop.f32.mrb[0].mxu0
        %v919 = vadd.f32 %v458, %v918
        %v920 = vpop.f32.mrb[0].mxu0
        %v921 = vpop.f32.mrb[0].mxu0
        %v922 = vadd.f32 %v458, %v921
        %v923 = vpop.f32.mrb[0].mxu0
        %924 = vdwg.mxu0
        %v925 = vtanh.pop %v543
        %v926 = vtanh.pop %v546
        %v927 = vtanh.pop %v551
        %v928 = vtanh.pop %v554
        %v929 = vtanh.pop %v559
        %v930 = vtanh.pop %v562
        %v931 = vtanh.pop %v567
        %v932 = vtanh.pop %v570
        %v933 = vtanh.pop %v575
        %v934 = vtanh.pop %v578
        %v935 = vtanh.pop %v583
        %v936 = vtanh.pop %v586
        %v937 = vtanh.pop %v591
        %v938 = vtanh.pop %v594
        %v939 = vtanh.pop %v599
        %v940 = vtanh.pop %v602
        %v941 = vtanh.pop %v607
        %v942 = vtanh.pop %v610
        %v943 = vtanh.pop %v615
        %v944 = vtanh.pop %v618
        %v945 = vtanh.pop %v623
        %v946 = vtanh.pop %v626
        %v947 = vtanh.pop %v631
        %v948 = vtanh.pop %v634
        %v949 = vtanh.pop %v639
        %v950 = vtanh.pop %v642
        %v951 = vtanh.pop %v647
        %v952 = vtanh.pop %v650
        %v953 = vtanh.pop %v655
        %v954 = vtanh.pop %v658
        %v955 = vtanh.pop %v663
        %v956 = vtanh.pop %v666
        %v957 = vtanh.pop %v671
        %v958 = vtanh.pop %v674
        %v959 = vtanh.pop %v679
        %v960 = vtanh.pop %v682
        %v961 = vtanh.pop %v687
        %v962 = vtanh.pop %v690
        %v963 = vtanh.pop %v695
        %v964 = vtanh.pop %v698
        %v965 = vtanh.pop %v703
        %v966 = vtanh.pop %v706
        %v967 = vtanh.pop %v711
        %v968 = vtanh.pop %v714
        %v969 = vtanh.pop %v719
        %v970 = vtanh.pop %v722
        %v971 = vtanh.pop %v727
        %v972 = vtanh.pop %v730
        %v973 = vtanh.pop %v735
        %v974 = vtanh.pop %v738
        %v975 = vtanh.pop %v743
        %v976 = vtanh.pop %v746
        %v977 = vtanh.pop %v751
        %v978 = vtanh.pop %v754
        %v979 = vtanh.pop %v759
        %v980 = vtanh.pop %v762
        %v981 = vtanh.pop %v767
        %v982 = vtanh.pop %v770
        %v983 = vtanh.pop %v775
        %v984 = vtanh.pop %v778
        %v985 = vtanh.pop %v783
        %v986 = vtanh.pop %v786
        %v987 = vtanh.pop %v791
        %v988 = vtanh.pop %v794
        %v989 = vtanh.pop %v799
        %v990 = vtanh.pop %v802
        %v991 = vtanh.pop %v807
        %v992 = vtanh.pop %v810
        %v993 = vtanh.pop %v815
        %v994 = vtanh.pop %v818
        %v995 = vtanh.pop %v823
        %v996 = vtanh.pop %v826
        %v997 = vtanh.pop %v831
        %v998 = vtanh.pop %v834
        %v999 = vtanh.pop %v839
        %v1000 = vtanh.pop %v842
        %v1001 = vtanh.pop %v847
        %v1002 = vtanh.pop %v850
        %v1003 = vtanh.pop %v855
        %v1004 = vtanh.pop %v858
        %v1005 = vtanh.pop %v863
        %v1006 = vtanh.pop %v866
        %v1007 = vtanh.pop %v871
        %v1008 = vtanh.pop %v874
        %v1009 = vtanh.pop %v879
        %v1010 = vtanh.pop %v882
        %v1011 = vtanh.pop %v887
        %v1012 = vtanh.pop %v890
        %v1013 = vtanh.pop %v895
        %v1014 = vtanh.pop %v898
        %v1015 = vtanh.pop %v903
        %v1016 = vtanh.pop %v906
        %v1017 = vtanh.pop %v911
        %v1018 = vtanh.pop %v914
        %v1019 = vtanh.pop %v919
        %v1020 = vtanh.pop %v922
        %v1021 = vld [vmem:[#allocation8] sm:$0x1]
        %v1023 = vlaneseq
        %v1024 = vshrl.u32 %v1023, 7
        %v1025 = vsub.s32 0, %v1024
        %v1026 = vrot.slane %v1021, %v1025
        %v1028 = vmul.f32 %v925, %v1026
        %v1029 = vmul.f32 %v926, %v1026
        %v1030 = vmul.f32 %v927, %v1026
        %v1031 = vmul.f32 %v928, %v1026
        %v1032 = vmul.f32 %v929, %v1026
        %v1033 = vmul.f32 %v930, %v1026
        %v1034 = vmul.f32 %v931, %v1026
        %v1035 = vmul.f32 %v932, %v1026
        %v1036 = vmul.f32 %v933, %v1026
        %v1037 = vmul.f32 %v934, %v1026
        %v1038 = vmul.f32 %v935, %v1026
        %v1039 = vmul.f32 %v936, %v1026
        %v1040 = vmul.f32 %v937, %v1026
        %v1041 = vmul.f32 %v938, %v1026
        %v1042 = vmul.f32 %v939, %v1026
        %v1043 = vmul.f32 %v940, %v1026
        %v1044 = vmul.f32 %v941, %v1026
        %v1045 = vmul.f32 %v942, %v1026
        %v1046 = vmul.f32 %v943, %v1026
        %v1047 = vmul.f32 %v944, %v1026
        %v1048 = vmul.f32 %v945, %v1026
        %v1049 = vmul.f32 %v946, %v1026
        %v1050 = vmul.f32 %v947, %v1026
        %v1051 = vmul.f32 %v948, %v1026
        %v1052 = vmul.f32 %v949, %v1026
        %v1053 = vmul.f32 %v950, %v1026
        %v1054 = vmul.f32 %v951, %v1026
        %v1055 = vmul.f32 %v952, %v1026
        %v1056 = vmul.f32 %v953, %v1026
        %v1057 = vmul.f32 %v954, %v1026
        %v1058 = vmul.f32 %v955, %v1026
        %v1059 = vmul.f32 %v956, %v1026
        %v1060 = vmul.f32 %v957, %v1026
        %v1061 = vmul.f32 %v958, %v1026
        %v1062 = vmul.f32 %v959, %v1026
        %v1063 = vmul.f32 %v960, %v1026
        %v1064 = vmul.f32 %v961, %v1026
        %v1065 = vmul.f32 %v962, %v1026
        %v1066 = vmul.f32 %v963, %v1026
        %v1067 = vmul.f32 %v964, %v1026
        %v1068 = vmul.f32 %v965, %v1026
        %v1069 = vmul.f32 %v966, %v1026
        %v1070 = vmul.f32 %v967, %v1026
        %v1071 = vmul.f32 %v968, %v1026
        %v1072 = vmul.f32 %v969, %v1026
        %v1073 = vmul.f32 %v970, %v1026
        %v1074 = vmul.f32 %v971, %v1026
        %v1075 = vmul.f32 %v972, %v1026
        %v1076 = vmul.f32 %v973, %v1026
        %v1077 = vmul.f32 %v974, %v1026
        %v1078 = vmul.f32 %v975, %v1026
        %v1079 = vmul.f32 %v976, %v1026
        %v1080 = vmul.f32 %v977, %v1026
        %v1081 = vmul.f32 %v978, %v1026
        %v1082 = vmul.f32 %v979, %v1026
        %v1083 = vmul.f32 %v980, %v1026
        %v1084 = vmul.f32 %v981, %v1026
        %v1085 = vmul.f32 %v982, %v1026
        %v1086 = vmul.f32 %v983, %v1026
        %v1087 = vmul.f32 %v984, %v1026
        %v1088 = vmul.f32 %v985, %v1026
        %v1089 = vmul.f32 %v986, %v1026
        %v1090 = vmul.f32 %v987, %v1026
        %v1091 = vmul.f32 %v988, %v1026
        %v1092 = vmul.f32 %v989, %v1026
        %v1093 = vmul.f32 %v990, %v1026
        %v1094 = vmul.f32 %v991, %v1026
        %v1095 = vmul.f32 %v992, %v1026
        %v1096 = vmul.f32 %v993, %v1026
        %v1097 = vmul.f32 %v994, %v1026
        %v1098 = vmul.f32 %v995, %v1026
        %v1099 = vmul.f32 %v996, %v1026
        %v1100 = vmul.f32 %v997, %v1026
        %v1101 = vmul.f32 %v998, %v1026
        %v1102 = vmul.f32 %v999, %v1026
        %v1103 = vmul.f32 %v1000, %v1026
        %v1104 = vmul.f32 %v1001, %v1026
        %v1105 = vmul.f32 %v1002, %v1026
        %v1106 = vmul.f32 %v1003, %v1026
        %v1107 = vmul.f32 %v1004, %v1026
        %v1108 = vmul.f32 %v1005, %v1026
        %v1109 = vmul.f32 %v1006, %v1026
        %v1110 = vmul.f32 %v1007, %v1026
        %v1111 = vmul.f32 %v1008, %v1026
        %v1112 = vmul.f32 %v1009, %v1026
        %v1113 = vmul.f32 %v1010, %v1026
        %v1114 = vmul.f32 %v1011, %v1026
        %v1115 = vmul.f32 %v1012, %v1026
        %v1116 = vmul.f32 %v1013, %v1026
        %v1117 = vmul.f32 %v1014, %v1026
        %v1118 = vmul.f32 %v1015, %v1026
        %v1119 = vmul.f32 %v1016, %v1026
        %v1120 = vmul.f32 %v1017, %v1026
        %v1121 = vmul.f32 %v1018, %v1026
        %v1122 = vmul.f32 %v1019, %v1026
        %v1123 = vmul.f32 %v1020, %v1026
        %1124 = vadd.xlane.f32.xlu0 %v1028
        %v1125 = vpop.xlane.xlu0 %1124
        %1126 = vadd.xlane.f32.xlu0 %v1029
        %v1127 = vpop.xlane.xlu0 %1126
        %1128 = vadd.xlane.f32.xlu0 %v1030
        %v1129 = vpop.xlane.xlu0 %1128
        %1130 = vadd.xlane.f32.xlu0 %v1031
        %v1131 = vpop.xlane.xlu0 %1130
        %1132 = vadd.xlane.f32.xlu0 %v1032
        %v1133 = vpop.xlane.xlu0 %1132
        %1134 = vadd.xlane.f32.xlu0 %v1033
        %v1135 = vpop.xlane.xlu0 %1134
        %1136 = vadd.xlane.f32.xlu0 %v1034
        %v1137 = vpop.xlane.xlu0 %1136
        %1138 = vadd.xlane.f32.xlu0 %v1035
        %v1139 = vpop.xlane.xlu0 %1138
        %1140 = vadd.xlane.f32.xlu0 %v1036
        %v1141 = vpop.xlane.xlu0 %1140
        %1142 = vadd.xlane.f32.xlu0 %v1037
        %v1143 = vpop.xlane.xlu0 %1142
        %1144 = vadd.xlane.f32.xlu0 %v1038
        %v1145 = vpop.xlane.xlu0 %1144
        %1146 = vadd.xlane.f32.xlu0 %v1039
        %v1147 = vpop.xlane.xlu0 %1146
        %1148 = vadd.xlane.f32.xlu0 %v1040
        %v1149 = vpop.xlane.xlu0 %1148
        %1150 = vadd.xlane.f32.xlu0 %v1041
        %v1151 = vpop.xlane.xlu0 %1150
        %1152 = vadd.xlane.f32.xlu0 %v1042
        %v1153 = vpop.xlane.xlu0 %1152
        %1154 = vadd.xlane.f32.xlu0 %v1043
        %v1155 = vpop.xlane.xlu0 %1154
        %1156 = vadd.xlane.f32.xlu0 %v1044
        %v1157 = vpop.xlane.xlu0 %1156
        %1158 = vadd.xlane.f32.xlu0 %v1045
        %v1159 = vpop.xlane.xlu0 %1158
        %1160 = vadd.xlane.f32.xlu0 %v1046
        %v1161 = vpop.xlane.xlu0 %1160
        %1162 = vadd.xlane.f32.xlu0 %v1047
        %v1163 = vpop.xlane.xlu0 %1162
        %1164 = vadd.xlane.f32.xlu0 %v1048
        %v1165 = vpop.xlane.xlu0 %1164
        %1166 = vadd.xlane.f32.xlu0 %v1049
        %v1167 = vpop.xlane.xlu0 %1166
        %1168 = vadd.xlane.f32.xlu0 %v1050
        %v1169 = vpop.xlane.xlu0 %1168
        %1170 = vadd.xlane.f32.xlu0 %v1051
        %v1171 = vpop.xlane.xlu0 %1170
        %1172 = vadd.xlane.f32.xlu0 %v1052
        %v1173 = vpop.xlane.xlu0 %1172
        %1174 = vadd.xlane.f32.xlu0 %v1053
        %v1175 = vpop.xlane.xlu0 %1174
        %1176 = vadd.xlane.f32.xlu0 %v1054
        %v1177 = vpop.xlane.xlu0 %1176
        %1178 = vadd.xlane.f32.xlu0 %v1055
        %v1179 = vpop.xlane.xlu0 %1178
        %1180 = vadd.xlane.f32.xlu0 %v1056
        %v1181 = vpop.xlane.xlu0 %1180
        %1182 = vadd.xlane.f32.xlu0 %v1057
        %v1183 = vpop.xlane.xlu0 %1182
        %1184 = vadd.xlane.f32.xlu0 %v1058
        %v1185 = vpop.xlane.xlu0 %1184
        %1186 = vadd.xlane.f32.xlu0 %v1059
        %v1187 = vpop.xlane.xlu0 %1186
        %1188 = vadd.xlane.f32.xlu0 %v1060
        %v1189 = vpop.xlane.xlu0 %1188
        %1190 = vadd.xlane.f32.xlu0 %v1061
        %v1191 = vpop.xlane.xlu0 %1190
        %1192 = vadd.xlane.f32.xlu0 %v1062
        %v1193 = vpop.xlane.xlu0 %1192
        %1194 = vadd.xlane.f32.xlu0 %v1063
        %v1195 = vpop.xlane.xlu0 %1194
        %1196 = vadd.xlane.f32.xlu0 %v1064
        %v1197 = vpop.xlane.xlu0 %1196
        %1198 = vadd.xlane.f32.xlu0 %v1065
        %v1199 = vpop.xlane.xlu0 %1198
        %1200 = vadd.xlane.f32.xlu0 %v1066
        %v1201 = vpop.xlane.xlu0 %1200
        %1202 = vadd.xlane.f32.xlu0 %v1067
        %v1203 = vpop.xlane.xlu0 %1202
        %1204 = vadd.xlane.f32.xlu0 %v1068
        %v1205 = vpop.xlane.xlu0 %1204
        %1206 = vadd.xlane.f32.xlu0 %v1069
        %v1207 = vpop.xlane.xlu0 %1206
        %1208 = vadd.xlane.f32.xlu0 %v1070
        %v1209 = vpop.xlane.xlu0 %1208
        %1210 = vadd.xlane.f32.xlu0 %v1071
        %v1211 = vpop.xlane.xlu0 %1210
        %1212 = vadd.xlane.f32.xlu0 %v1072
        %v1213 = vpop.xlane.xlu0 %1212
        %1214 = vadd.xlane.f32.xlu0 %v1073
        %v1215 = vpop.xlane.xlu0 %1214
        %1216 = vadd.xlane.f32.xlu0 %v1074
        %v1217 = vpop.xlane.xlu0 %1216
        %1218 = vadd.xlane.f32.xlu0 %v1075
        %v1219 = vpop.xlane.xlu0 %1218
        %1220 = vadd.xlane.f32.xlu0 %v1076
        %v1221 = vpop.xlane.xlu0 %1220
        %1222 = vadd.xlane.f32.xlu0 %v1077
        %v1223 = vpop.xlane.xlu0 %1222
        %1224 = vadd.xlane.f32.xlu0 %v1078
        %v1225 = vpop.xlane.xlu0 %1224
        %1226 = vadd.xlane.f32.xlu0 %v1079
        %v1227 = vpop.xlane.xlu0 %1226
        %1228 = vadd.xlane.f32.xlu0 %v1080
        %v1229 = vpop.xlane.xlu0 %1228
        %1230 = vadd.xlane.f32.xlu0 %v1081
        %v1231 = vpop.xlane.xlu0 %1230
        %1232 = vadd.xlane.f32.xlu0 %v1082
        %v1233 = vpop.xlane.xlu0 %1232
        %1234 = vadd.xlane.f32.xlu0 %v1083
        %v1235 = vpop.xlane.xlu0 %1234
        %1236 = vadd.xlane.f32.xlu0 %v1084
        %v1237 = vpop.xlane.xlu0 %1236
        %1238 = vadd.xlane.f32.xlu0 %v1085
        %v1239 = vpop.xlane.xlu0 %1238
        %1240 = vadd.xlane.f32.xlu0 %v1086
        %v1241 = vpop.xlane.xlu0 %1240
        %1242 = vadd.xlane.f32.xlu0 %v1087
        %v1243 = vpop.xlane.xlu0 %1242
        %1244 = vadd.xlane.f32.xlu0 %v1088
        %v1245 = vpop.xlane.xlu0 %1244
        %1246 = vadd.xlane.f32.xlu0 %v1089
        %v1247 = vpop.xlane.xlu0 %1246
        %1248 = vadd.xlane.f32.xlu0 %v1090
        %v1249 = vpop.xlane.xlu0 %1248
        %1250 = vadd.xlane.f32.xlu0 %v1091
        %v1251 = vpop.xlane.xlu0 %1250
        %1252 = vadd.xlane.f32.xlu0 %v1092
        %v1253 = vpop.xlane.xlu0 %1252
        %1254 = vadd.xlane.f32.xlu0 %v1093
        %v1255 = vpop.xlane.xlu0 %1254
        %1256 = vadd.xlane.f32.xlu0 %v1094
        %v1257 = vpop.xlane.xlu0 %1256
        %1258 = vadd.xlane.f32.xlu0 %v1095
        %v1259 = vpop.xlane.xlu0 %1258
        %1260 = vadd.xlane.f32.xlu0 %v1096
        %v1261 = vpop.xlane.xlu0 %1260
        %1262 = vadd.xlane.f32.xlu0 %v1097
        %v1263 = vpop.xlane.xlu0 %1262
        %1264 = vadd.xlane.f32.xlu0 %v1098
        %v1265 = vpop.xlane.xlu0 %1264
        %1266 = vadd.xlane.f32.xlu0 %v1099
        %v1267 = vpop.xlane.xlu0 %1266
        %1268 = vadd.xlane.f32.xlu0 %v1100
        %v1269 = vpop.xlane.xlu0 %1268
        %1270 = vadd.xlane.f32.xlu0 %v1101
        %v1271 = vpop.xlane.xlu0 %1270
        %1272 = vadd.xlane.f32.xlu0 %v1102
        %v1273 = vpop.xlane.xlu0 %1272
        %1274 = vadd.xlane.f32.xlu0 %v1103
        %v1275 = vpop.xlane.xlu0 %1274
        %1276 = vadd.xlane.f32.xlu0 %v1104
        %v1277 = vpop.xlane.xlu0 %1276
        %1278 = vadd.xlane.f32.xlu0 %v1105
        %v1279 = vpop.xlane.xlu0 %1278
        %1280 = vadd.xlane.f32.xlu0 %v1106
        %v1281 = vpop.xlane.xlu0 %1280
        %1282 = vadd.xlane.f32.xlu0 %v1107
        %v1283 = vpop.xlane.xlu0 %1282
        %1284 = vadd.xlane.f32.xlu0 %v1108
        %v1285 = vpop.xlane.xlu0 %1284
        %1286 = vadd.xlane.f32.xlu0 %v1109
        %v1287 = vpop.xlane.xlu0 %1286
        %1288 = vadd.xlane.f32.xlu0 %v1110
        %v1289 = vpop.xlane.xlu0 %1288
        %1290 = vadd.xlane.f32.xlu0 %v1111
        %v1291 = vpop.xlane.xlu0 %1290
        %1292 = vadd.xlane.f32.xlu0 %v1112
        %v1293 = vpop.xlane.xlu0 %1292
        %1294 = vadd.xlane.f32.xlu0 %v1113
        %v1295 = vpop.xlane.xlu0 %1294
        %1296 = vadd.xlane.f32.xlu0 %v1114
        %v1297 = vpop.xlane.xlu0 %1296
        %1298 = vadd.xlane.f32.xlu0 %v1115
        %v1299 = vpop.xlane.xlu0 %1298
        %1300 = vadd.xlane.f32.xlu0 %v1116
        %v1301 = vpop.xlane.xlu0 %1300
        %1302 = vadd.xlane.f32.xlu0 %v1117
        %v1303 = vpop.xlane.xlu0 %1302
        %1304 = vadd.xlane.f32.xlu0 %v1118
        %v1305 = vpop.xlane.xlu0 %1304
        %1306 = vadd.xlane.f32.xlu0 %v1119
        %v1307 = vpop.xlane.xlu0 %1306
        %1308 = vadd.xlane.f32.xlu0 %v1120
        %v1309 = vpop.xlane.xlu0 %1308
        %1310 = vadd.xlane.f32.xlu0 %v1121
        %v1311 = vpop.xlane.xlu0 %1310
        %1312 = vadd.xlane.f32.xlu0 %v1122
        %v1313 = vpop.xlane.xlu0 %1312
        %1314 = vadd.xlane.f32.xlu0 %v1123
        %v1315 = vpop.xlane.xlu0 %1314
        %v1316 = vlaneseq
        %v1317 = vshrl.u32 %v1316, 7
        %v1318 = vadd.s32 %v1317, 8
        %v1319 = vadd.s32 %v1317, 16
        %v1320 = vadd.s32 %v1317, 24
        %v1321 = vadd.s32 %v1317, 32
        %v1322 = vadd.s32 %v1317, 40
        %v1323 = vadd.s32 %v1317, 48
        %v1324 = vadd.s32 %v1317, 56
        %v1325 = vadd.s32 %v1317, 64
        %v1326 = vadd.s32 %v1317, 72
        %v1327 = vadd.s32 %v1317, 80
        %v1328 = vadd.s32 %v1317, 88
        %v1329 = vadd.s32 %v1317, 96
        %v1330 = vadd.s32 %v1317, 104
        %v1331 = vadd.s32 %v1317, 112
        %v1332 = vadd.s32 %v1317, 120
        %v1333 = vadd.s32 %v1317, 128
        %v1334 = vadd.s32 %v1317, 136
        %v1335 = vadd.s32 %v1317, 144
        %v1336 = vadd.s32 %v1317, 152
        %v1337 = vadd.s32 %v1317, 160
        %v1338 = vadd.s32 %v1317, 168
        %v1339 = vadd.s32 %v1317, 176
        %v1340 = vadd.s32 %v1317, 184
        %v1341 = vadd.s32 %v1317, 192
        %v1342 = vadd.s32 %v1317, 200
        %v1343 = vadd.s32 %v1317, 208
        %v1344 = vadd.s32 %v1317, 216
        %v1345 = vadd.s32 %v1317, 224
        %v1346 = vadd.s32 %v1317, 232
        %v1347 = vadd.s32 %v1317, 240
        %v1348 = vadd.s32 %v1317, 248
        %s1349 = smul.u32 %s23, 256
        %v1350 = vstv %s1349
        %v1351 = vadd.s32 %v1350, %v1317
        %v1352 = vadd.s32 %v1350, %v1318
        %v1353 = vadd.s32 %v1350, %v1319
        %v1354 = vadd.s32 %v1350, %v1320
        %v1355 = vadd.s32 %v1350, %v1321
        %v1356 = vadd.s32 %v1350, %v1322
        %v1357 = vadd.s32 %v1350, %v1323
        %v1358 = vadd.s32 %v1350, %v1324
        %v1359 = vadd.s32 %v1350, %v1325
        %v1360 = vadd.s32 %v1350, %v1326
        %v1361 = vadd.s32 %v1350, %v1327
        %v1362 = vadd.s32 %v1350, %v1328
        %v1363 = vadd.s32 %v1350, %v1329
        %v1364 = vadd.s32 %v1350, %v1330
        %v1365 = vadd.s32 %v1350, %v1331
        %v1366 = vadd.s32 %v1350, %v1332
        %v1367 = vadd.s32 %v1350, %v1333
        %v1368 = vadd.s32 %v1350, %v1334
        %v1369 = vadd.s32 %v1350, %v1335
        %v1370 = vadd.s32 %v1350, %v1336
        %v1371 = vadd.s32 %v1350, %v1337
        %v1372 = vadd.s32 %v1350, %v1338
        %v1373 = vadd.s32 %v1350, %v1339
        %v1374 = vadd.s32 %v1350, %v1340
        %v1375 = vadd.s32 %v1350, %v1341
        %v1376 = vadd.s32 %v1350, %v1342
        %v1377 = vadd.s32 %v1350, %v1343
        %v1378 = vadd.s32 %v1350, %v1344
        %v1379 = vadd.s32 %v1350, %v1345
        %v1380 = vadd.s32 %v1350, %v1346
        %v1381 = vadd.s32 %v1350, %v1347
        %v1382 = vadd.s32 %v1350, %v1348
        %vm1383 = vcmp.lt.s32.totalorder %v1351, 777
        %vm1384 = vcmp.lt.s32.totalorder %v1352, 777
        %vm1385 = vcmp.lt.s32.totalorder %v1353, 777
        %vm1386 = vcmp.lt.s32.totalorder %v1354, 777
        %vm1387 = vcmp.lt.s32.totalorder %v1355, 777
        %vm1388 = vcmp.lt.s32.totalorder %v1356, 777
        %vm1389 = vcmp.lt.s32.totalorder %v1357, 777
        %vm1390 = vcmp.lt.s32.totalorder %v1358, 777
        %vm1391 = vcmp.lt.s32.totalorder %v1359, 777
        %vm1392 = vcmp.lt.s32.totalorder %v1360, 777
        %vm1393 = vcmp.lt.s32.totalorder %v1361, 777
        %vm1394 = vcmp.lt.s32.totalorder %v1362, 777
        %vm1395 = vcmp.lt.s32.totalorder %v1363, 777
        %vm1396 = vcmp.lt.s32.totalorder %v1364, 777
        %vm1397 = vcmp.lt.s32.totalorder %v1365, 777
        %vm1398 = vcmp.lt.s32.totalorder %v1366, 777
        %vm1399 = vcmp.lt.s32.totalorder %v1367, 777
        %vm1400 = vcmp.lt.s32.totalorder %v1368, 777
        %vm1401 = vcmp.lt.s32.totalorder %v1369, 777
        %vm1402 = vcmp.lt.s32.totalorder %v1370, 777
        %vm1403 = vcmp.lt.s32.totalorder %v1371, 777
        %vm1404 = vcmp.lt.s32.totalorder %v1372, 777
        %vm1405 = vcmp.lt.s32.totalorder %v1373, 777
        %vm1406 = vcmp.lt.s32.totalorder %v1374, 777
        %vm1407 = vcmp.lt.s32.totalorder %v1375, 777
        %vm1408 = vcmp.lt.s32.totalorder %v1376, 777
        %vm1409 = vcmp.lt.s32.totalorder %v1377, 777
        %vm1410 = vcmp.lt.s32.totalorder %v1378, 777
        %vm1411 = vcmp.lt.s32.totalorder %v1379, 777
        %vm1412 = vcmp.lt.s32.totalorder %v1380, 777
        %vm1413 = vcmp.lt.s32.totalorder %v1381, 777
        %vm1414 = vcmp.lt.s32.totalorder %v1382, 777
        %v1415 = vlaneseq
        %v1416 = vand.u32 %v1415, 127
        %v1417 = vsel %vm1383, %v1125, 0.0
        %v1418 = vsel %vm1384, %v1127, 0.0
        %v1419 = vsel %vm1385, %v1129, 0.0
        %v1420 = vsel %vm1386, %v1131, 0.0
        %v1421 = vsel %vm1387, %v1133, 0.0
        %v1422 = vsel %vm1388, %v1135, 0.0
        %v1423 = vsel %vm1389, %v1137, 0.0
        %v1424 = vsel %vm1390, %v1139, 0.0
        %v1425 = vsel %vm1391, %v1141, 0.0
        %v1426 = vsel %vm1392, %v1143, 0.0
        %v1427 = vsel %vm1393, %v1145, 0.0
        %v1428 = vsel %vm1394, %v1147, 0.0
        %v1429 = vsel %vm1395, %v1149, 0.0
        %v1430 = vsel %vm1396, %v1151, 0.0
        %v1431 = vsel %vm1397, %v1153, 0.0
        %v1432 = vsel %vm1398, %v1155, 0.0
        %v1433 = vsel %vm1399, %v1157, 0.0
        %v1434 = vsel %vm1400, %v1159, 0.0
        %v1435 = vsel %vm1401, %v1161, 0.0
        %v1436 = vsel %vm1402, %v1163, 0.0
        %v1437 = vsel %vm1403, %v1165, 0.0
        %v1438 = vsel %vm1404, %v1167, 0.0
        %v1439 = vsel %vm1405, %v1169, 0.0
        %v1440 = vsel %vm1406, %v1171, 0.0
        %v1441 = vsel %vm1407, %v1173, 0.0
        %v1442 = vsel %vm1408, %v1175, 0.0
        %v1443 = vsel %vm1409, %v1177, 0.0
        %v1444 = vsel %vm1410, %v1179, 0.0
        %v1445 = vsel %vm1411, %v1181, 0.0
        %v1446 = vsel %vm1412, %v1183, 0.0
        %v1447 = vsel %vm1413, %v1185, 0.0
        %v1448 = vsel %vm1414, %v1187, 0.0
        %vm1449 = vcmask 7168
        %v1450 = vsel %vm1449, %v1417, 0.0
        %v1451 = vsel %vm1449, %v1418, 0.0
        %v1452 = vadd.f32 %v1450, %v1451
        %v1453 = vsel %vm1449, %v1419, 0.0
        %v1454 = vadd.f32 %v1452, %v1453
        %v1455 = vsel %vm1449, %v1420, 0.0
        %v1456 = vadd.f32 %v1454, %v1455
        %v1457 = vsel %vm1449, %v1421, 0.0
        %v1458 = vadd.f32 %v1456, %v1457
        %v1459 = vsel %vm1449, %v1422, 0.0
        %v1460 = vadd.f32 %v1458, %v1459
        %v1461 = vsel %vm1449, %v1423, 0.0
        %v1462 = vadd.f32 %v1460, %v1461
        %v1463 = vsel %vm1449, %v1424, 0.0
        %v1464 = vadd.f32 %v1462, %v1463
        %v1465 = vsel %vm1449, %v1425, 0.0
        %v1466 = vadd.f32 %v1464, %v1465
        %v1467 = vsel %vm1449, %v1426, 0.0
        %v1468 = vadd.f32 %v1466, %v1467
        %v1469 = vsel %vm1449, %v1427, 0.0
        %v1470 = vadd.f32 %v1468, %v1469
        %v1471 = vsel %vm1449, %v1428, 0.0
        %v1472 = vadd.f32 %v1470, %v1471
        %v1473 = vsel %vm1449, %v1429, 0.0
        %v1474 = vadd.f32 %v1472, %v1473
        %v1475 = vsel %vm1449, %v1430, 0.0
        %v1476 = vadd.f32 %v1474, %v1475
        %v1477 = vsel %vm1449, %v1431, 0.0
        %v1478 = vadd.f32 %v1476, %v1477
        %v1479 = vsel %vm1449, %v1432, 0.0
        %v1480 = vadd.f32 %v1478, %v1479
        %v1481 = vsel %vm1449, %v1433, 0.0
        %v1482 = vadd.f32 %v1480, %v1481
        %v1483 = vsel %vm1449, %v1434, 0.0
        %v1484 = vadd.f32 %v1482, %v1483
        %v1485 = vsel %vm1449, %v1435, 0.0
        %v1486 = vadd.f32 %v1484, %v1485
        %v1487 = vsel %vm1449, %v1436, 0.0
        %v1488 = vadd.f32 %v1486, %v1487
        %v1489 = vsel %vm1449, %v1437, 0.0
        %v1490 = vadd.f32 %v1488, %v1489
        %v1491 = vsel %vm1449, %v1438, 0.0
        %v1492 = vadd.f32 %v1490, %v1491
        %v1493 = vsel %vm1449, %v1439, 0.0
        %v1494 = vadd.f32 %v1492, %v1493
        %v1495 = vsel %vm1449, %v1440, 0.0
        %v1496 = vadd.f32 %v1494, %v1495
        %v1497 = vsel %vm1449, %v1441, 0.0
        %v1498 = vadd.f32 %v1496, %v1497
        %v1499 = vsel %vm1449, %v1442, 0.0
        %v1500 = vadd.f32 %v1498, %v1499
        %v1501 = vsel %vm1449, %v1443, 0.0
        %v1502 = vadd.f32 %v1500, %v1501
        %v1503 = vsel %vm1449, %v1444, 0.0
        %v1504 = vadd.f32 %v1502, %v1503
        %v1505 = vsel %vm1449, %v1445, 0.0
        %v1506 = vadd.f32 %v1504, %v1505
        %v1507 = vsel %vm1449, %v1446, 0.0
        %v1508 = vadd.f32 %v1506, %v1507
        %v1509 = vsel %vm1449, %v1447, 0.0
        %v1510 = vadd.f32 %v1508, %v1509
        %v1511 = vsel %vm1449, %v1448, 0.0
        %v1512 = vadd.f32 %v1510, %v1511
        %1513 = vadd.xlane.f32.xlu0 %v1512
        %v1514 = vpop.xlane.xlu0 %1513
        %v1515 = vrot.slane %v1514, 4
        %v1516 = vadd.f32 %v1514, %v1515
        %v1517 = vrot.slane %v1516, 2
        %v1518 = vadd.f32 %v1516, %v1517
        %v1519 = vrot.slane %v1518, 1
        %v1520 = vadd.f32 %v1518, %v1519
        %s1521 = vtos %v1520
        %vm1522 = vcmp.eq.s32.totalorder %v1416, 0
        %v1523 = vstv %s1521
        %v1524 = vsel %vm1522, %v1523, 0.0
        %v1525 = vadd.f32 %v1524, 0.0
        %v1526 = vsel %vm1383, %v1189, 0.0
        %v1527 = vsel %vm1384, %v1191, 0.0
        %v1528 = vsel %vm1385, %v1193, 0.0
        %v1529 = vsel %vm1386, %v1195, 0.0
        %v1530 = vsel %vm1387, %v1197, 0.0
        %v1531 = vsel %vm1388, %v1199, 0.0
        %v1532 = vsel %vm1389, %v1201, 0.0
        %v1533 = vsel %vm1390, %v1203, 0.0
        %v1534 = vsel %vm1391, %v1205, 0.0
        %v1535 = vsel %vm1392, %v1207, 0.0
        %v1536 = vsel %vm1393, %v1209, 0.0
        %v1537 = vsel %vm1394, %v1211, 0.0
        %v1538 = vsel %vm1395, %v1213, 0.0
        %v1539 = vsel %vm1396, %v1215, 0.0
        %v1540 = vsel %vm1397, %v1217, 0.0
        %v1541 = vsel %vm1398, %v1219, 0.0
        %v1542 = vsel %vm1399, %v1221, 0.0
        %v1543 = vsel %vm1400, %v1223, 0.0
        %v1544 = vsel %vm1401, %v1225, 0.0
        %v1545 = vsel %vm1402, %v1227, 0.0
        %v1546 = vsel %vm1403, %v1229, 0.0
        %v1547 = vsel %vm1404, %v1231, 0.0
        %v1548 = vsel %vm1405, %v1233, 0.0
        %v1549 = vsel %vm1406, %v1235, 0.0
        %v1550 = vsel %vm1407, %v1237, 0.0
        %v1551 = vsel %vm1408, %v1239, 0.0
        %v1552 = vsel %vm1409, %v1241, 0.0
        %v1553 = vsel %vm1410, %v1243, 0.0
        %v1554 = vsel %vm1411, %v1245, 0.0
        %v1555 = vsel %vm1412, %v1247, 0.0
        %v1556 = vsel %vm1413, %v1249, 0.0
        %v1557 = vsel %vm1414, %v1251, 0.0
        %v1558 = vsel %vm1449, %v1526, 0.0
        %v1559 = vsel %vm1449, %v1527, 0.0
        %v1560 = vadd.f32 %v1558, %v1559
        %v1561 = vsel %vm1449, %v1528, 0.0
        %v1562 = vadd.f32 %v1560, %v1561
        %v1563 = vsel %vm1449, %v1529, 0.0
        %v1564 = vadd.f32 %v1562, %v1563
        %v1565 = vsel %vm1449, %v1530, 0.0
        %v1566 = vadd.f32 %v1564, %v1565
        %v1567 = vsel %vm1449, %v1531, 0.0
        %v1568 = vadd.f32 %v1566, %v1567
        %v1569 = vsel %vm1449, %v1532, 0.0
        %v1570 = vadd.f32 %v1568, %v1569
        %v1571 = vsel %vm1449, %v1533, 0.0
        %v1572 = vadd.f32 %v1570, %v1571
        %v1573 = vsel %vm1449, %v1534, 0.0
        %v1574 = vadd.f32 %v1572, %v1573
        %v1575 = vsel %vm1449, %v1535, 0.0
        %v1576 = vadd.f32 %v1574, %v1575
        %v1577 = vsel %vm1449, %v1536, 0.0
        %v1578 = vadd.f32 %v1576, %v1577
        %v1579 = vsel %vm1449, %v1537, 0.0
        %v1580 = vadd.f32 %v1578, %v1579
        %v1581 = vsel %vm1449, %v1538, 0.0
        %v1582 = vadd.f32 %v1580, %v1581
        %v1583 = vsel %vm1449, %v1539, 0.0
        %v1584 = vadd.f32 %v1582, %v1583
        %v1585 = vsel %vm1449, %v1540, 0.0
        %v1586 = vadd.f32 %v1584, %v1585
        %v1587 = vsel %vm1449, %v1541, 0.0
        %v1588 = vadd.f32 %v1586, %v1587
        %v1589 = vsel %vm1449, %v1542, 0.0
        %v1590 = vadd.f32 %v1588, %v1589
        %v1591 = vsel %vm1449, %v1543, 0.0
        %v1592 = vadd.f32 %v1590, %v1591
        %v1593 = vsel %vm1449, %v1544, 0.0
        %v1594 = vadd.f32 %v1592, %v1593
        %v1595 = vsel %vm1449, %v1545, 0.0
        %v1596 = vadd.f32 %v1594, %v1595
        %v1597 = vsel %vm1449, %v1546, 0.0
        %v1598 = vadd.f32 %v1596, %v1597
        %v1599 = vsel %vm1449, %v1547, 0.0
        %v1600 = vadd.f32 %v1598, %v1599
        %v1601 = vsel %vm1449, %v1548, 0.0
        %v1602 = vadd.f32 %v1600, %v1601
        %v1603 = vsel %vm1449, %v1549, 0.0
        %v1604 = vadd.f32 %v1602, %v1603
        %v1605 = vsel %vm1449, %v1550, 0.0
        %v1606 = vadd.f32 %v1604, %v1605
        %v1607 = vsel %vm1449, %v1551, 0.0
        %v1608 = vadd.f32 %v1606, %v1607
        %v1609 = vsel %vm1449, %v1552, 0.0
        %v1610 = vadd.f32 %v1608, %v1609
        %v1611 = vsel %vm1449, %v1553, 0.0
        %v1612 = vadd.f32 %v1610, %v1611
        %v1613 = vsel %vm1449, %v1554, 0.0
        %v1614 = vadd.f32 %v1612, %v1613
        %v1615 = vsel %vm1449, %v1555, 0.0
        %v1616 = vadd.f32 %v1614, %v1615
        %v1617 = vsel %vm1449, %v1556, 0.0
        %v1618 = vadd.f32 %v1616, %v1617
        %v1619 = vsel %vm1449, %v1557, 0.0
        %v1620 = vadd.f32 %v1618, %v1619
        %1621 = vadd.xlane.f32.xlu0 %v1620
        %v1622 = vpop.xlane.xlu0 %1621
        %v1623 = vrot.slane %v1622, 4
        %v1624 = vadd.f32 %v1622, %v1623
        %v1625 = vrot.slane %v1624, 2
        %v1626 = vadd.f32 %v1624, %v1625
        %v1627 = vrot.slane %v1626, 1
        %v1628 = vadd.f32 %v1626, %v1627
        %s1629 = vtos %v1628
        %vm1630 = vcmp.eq.s32.totalorder %v1416, 1
        %v1631 = vstv %s1629
        %v1632 = vsel %vm1630, %v1631, 0.0
        %v1633 = vadd.f32 %v1525, %v1632
        %v1634 = vsel %vm1383, %v1253, 0.0
        %v1635 = vsel %vm1384, %v1255, 0.0
        %v1636 = vsel %vm1385, %v1257, 0.0
        %v1637 = vsel %vm1386, %v1259, 0.0
        %v1638 = vsel %vm1387, %v1261, 0.0
        %v1639 = vsel %vm1388, %v1263, 0.0
        %v1640 = vsel %vm1389, %v1265, 0.0
        %v1641 = vsel %vm1390, %v1267, 0.0
        %v1642 = vsel %vm1391, %v1269, 0.0
        %v1643 = vsel %vm1392, %v1271, 0.0
        %v1644 = vsel %vm1393, %v1273, 0.0
        %v1645 = vsel %vm1394, %v1275, 0.0
        %v1646 = vsel %vm1395, %v1277, 0.0
        %v1647 = vsel %vm1396, %v1279, 0.0
        %v1648 = vsel %vm1397, %v1281, 0.0
        %v1649 = vsel %vm1398, %v1283, 0.0
        %v1650 = vsel %vm1399, %v1285, 0.0
        %v1651 = vsel %vm1400, %v1287, 0.0
        %v1652 = vsel %vm1401, %v1289, 0.0
        %v1653 = vsel %vm1402, %v1291, 0.0
        %v1654 = vsel %vm1403, %v1293, 0.0
        %v1655 = vsel %vm1404, %v1295, 0.0
        %v1656 = vsel %vm1405, %v1297, 0.0
        %v1657 = vsel %vm1406, %v1299, 0.0
        %v1658 = vsel %vm1407, %v1301, 0.0
        %v1659 = vsel %vm1408, %v1303, 0.0
        %v1660 = vsel %vm1409, %v1305, 0.0
        %v1661 = vsel %vm1410, %v1307, 0.0
        %v1662 = vsel %vm1411, %v1309, 0.0
        %v1663 = vsel %vm1412, %v1311, 0.0
        %v1664 = vsel %vm1413, %v1313, 0.0
        %v1665 = vsel %vm1414, %v1315, 0.0
        %v1666 = vsel %vm1449, %v1634, 0.0
        %v1667 = vsel %vm1449, %v1635, 0.0
        %v1668 = vadd.f32 %v1666, %v1667
        %v1669 = vsel %vm1449, %v1636, 0.0
        %v1670 = vadd.f32 %v1668, %v1669
        %v1671 = vsel %vm1449, %v1637, 0.0
        %v1672 = vadd.f32 %v1670, %v1671
        %v1673 = vsel %vm1449, %v1638, 0.0
        %v1674 = vadd.f32 %v1672, %v1673
        %v1675 = vsel %vm1449, %v1639, 0.0
        %v1676 = vadd.f32 %v1674, %v1675
        %v1677 = vsel %vm1449, %v1640, 0.0
        %v1678 = vadd.f32 %v1676, %v1677
        %v1679 = vsel %vm1449, %v1641, 0.0
        %v1680 = vadd.f32 %v1678, %v1679
        %v1681 = vsel %vm1449, %v1642, 0.0
        %v1682 = vadd.f32 %v1680, %v1681
        %v1683 = vsel %vm1449, %v1643, 0.0
        %v1684 = vadd.f32 %v1682, %v1683
        %v1685 = vsel %vm1449, %v1644, 0.0
        %v1686 = vadd.f32 %v1684, %v1685
        %v1687 = vsel %vm1449, %v1645, 0.0
        %v1688 = vadd.f32 %v1686, %v1687
        %v1689 = vsel %vm1449, %v1646, 0.0
        %v1690 = vadd.f32 %v1688, %v1689
        %v1691 = vsel %vm1449, %v1647, 0.0
        %v1692 = vadd.f32 %v1690, %v1691
        %v1693 = vsel %vm1449, %v1648, 0.0
        %v1694 = vadd.f32 %v1692, %v1693
        %v1695 = vsel %vm1449, %v1649, 0.0
        %v1696 = vadd.f32 %v1694, %v1695
        %v1697 = vsel %vm1449, %v1650, 0.0
        %v1698 = vadd.f32 %v1696, %v1697
        %v1699 = vsel %vm1449, %v1651, 0.0
        %v1700 = vadd.f32 %v1698, %v1699
        %v1701 = vsel %vm1449, %v1652, 0.0
        %v1702 = vadd.f32 %v1700, %v1701
        %v1703 = vsel %vm1449, %v1653, 0.0
        %v1704 = vadd.f32 %v1702, %v1703
        %v1705 = vsel %vm1449, %v1654, 0.0
        %v1706 = vadd.f32 %v1704, %v1705
        %v1707 = vsel %vm1449, %v1655, 0.0
        %v1708 = vadd.f32 %v1706, %v1707
        %v1709 = vsel %vm1449, %v1656, 0.0
        %v1710 = vadd.f32 %v1708, %v1709
        %v1711 = vsel %vm1449, %v1657, 0.0
        %v1712 = vadd.f32 %v1710, %v1711
        %v1713 = vsel %vm1449, %v1658, 0.0
        %v1714 = vadd.f32 %v1712, %v1713
        %v1715 = vsel %vm1449, %v1659, 0.0
        %v1716 = vadd.f32 %v1714, %v1715
        %v1717 = vsel %vm1449, %v1660, 0.0
        %v1718 = vadd.f32 %v1716, %v1717
        %v1719 = vsel %vm1449, %v1661, 0.0
        %v1720 = vadd.f32 %v1718, %v1719
        %v1721 = vsel %vm1449, %v1662, 0.0
        %v1722 = vadd.f32 %v1720, %v1721
        %v1723 = vsel %vm1449, %v1663, 0.0
        %v1724 = vadd.f32 %v1722, %v1723
        %v1725 = vsel %vm1449, %v1664, 0.0
        %v1726 = vadd.f32 %v1724, %v1725
        %v1727 = vsel %vm1449, %v1665, 0.0
        %v1728 = vadd.f32 %v1726, %v1727
        %1729 = vadd.xlane.f32.xlu0 %v1728
        %v1730 = vpop.xlane.xlu0 %1729
        %v1731 = vrot.slane %v1730, 4
        %v1732 = vadd.f32 %v1730, %v1731
        %v1733 = vrot.slane %v1732, 2
        %v1734 = vadd.f32 %v1732, %v1733
        %v1735 = vrot.slane %v1734, 1
        %v1736 = vadd.f32 %v1734, %v1735
        %s1737 = vtos %v1736
        %vm1738 = vcmp.eq.s32.totalorder %v1416, 2
        %v1739 = vstv %s1737
        %v1740 = vsel %vm1738, %v1739, 0.0
        %v1741 = vadd.f32 %v1633, %v1740
        %1742 = vst [vmem:[%s286] sm:$0x1] %v1741
        %s1743 = sand.u32 %s120, 1
        %s1744 = scalar_lea.sflag [#allocation4], %s1743
        %s1745 = sand.u32 %s120, 1
        %s1746 = scalar_lea.vmem [#allocation10], %s1745
        // Predicated region
        $region53: #{tpu_custom_call.1} parent=35 // pred_check
          %p1747 = pneg %p130
        $region54: #{tpu_custom_call.1} parent=35 // pred_check_branch
          %1749 = sbr.rel (%p1747) target = $region56
        $region55: #{tpu_custom_call.1} parent=35 // pred_region
          %s1751 = ssub.s32 16, 16
          %1752 = vsyncadd %s1744, %s1751
          %s1753 = smul.addr %s23, 16
          %s1754 = scalar_lea.hbm %s4, %s1753
          %s1756 = sshll.u32 %s1746, 4
          %s1757 = int_to_ptr.vmem [resolvable:$true] %s1756
          %1759 = dma.vmem_to_hbm [thread:$0]  %s1757, 16, %s1754, %s1744
        $region56: #{tpu_custom_call.1} parent=35 // pred_fallthru
          _
      $region36: #{tpu_custom_call.1} parent=5 // pred_fallthru
        _
      %p1760 = scmp.le.s32.totalorder 2, %s18
      // Predicated region
      $region57: #{tpu_custom_call.1} parent=5 // pred_check
        %p1761 = pneg %p1760
      $region58: #{tpu_custom_call.1} parent=5 // pred_check_branch
        %1763 = sbr.rel (%p1761) target = $region60
      $region59: #{tpu_custom_call.1} parent=5 // pred_region
        %s1764 = ssub.s32 %s18, 2
        // Predicated region
        $region61: #{tpu_custom_call.1} parent=59 // pred_check
          %p1765 = pneg %p136
        $region62: #{tpu_custom_call.1} parent=59 // pred_check_branch
          %1767 = sbr.rel (%p1765) target = $region64
        $region63: #{tpu_custom_call.1} parent=59 // pred_region
          %s1768 = sand.u32 %s121, 1
          %s1769 = scalar_lea.sflag [#allocation4], %s1768
          %s1770 = sand.u32 %s121, 1
          %s1771 = scalar_lea.vmem [#allocation10], %s1770
          %1772 = dma.done %s1769, 16
        $region64: #{tpu_custom_call.1} parent=59 // pred_fallthru
          _
      $region60: #{tpu_custom_call.1} parent=5 // pred_fallthru
        _
    $region6: #{tpu_custom_call.1} parent=1 // loop_footer
      %s22 = sadd.s32 1, %s18
    $region7: #{tpu_custom_call.1} parent=1 // loop_footer_branch
      %17 = sbr.rel target = $region3
    $region8: #{tpu_custom_call.1} parent=1 // loop_exit
      _
    %1773 = vsyncpa [#allocation3], 1
    %s1774 = scalar_lea.sflag [#allocation3], 1
    %1775 = vsyncpa %s1774, 1
    %1776 = vsyncpa [#allocation6], 1
    %1777 = vsyncpa [#allocation9], 1
    %1778 = vsyncpa [#allocation4], 1
    %s1779 = scalar_lea.sflag [#allocation4], 1
    %1780 = vsyncpa %s1779, 1

</llo_original>
